<compile_context>
chip_gen: v6e
topology: v6e:2x2x1
jax: 0.10.0
libtpu: 0.0.40
codegen_flags: <defaults>
</compile_context>

<pallas_src>
import jax
import jax.numpy as jnp
from jax.experimental import pallas as pl
from jax.experimental.pallas import tpu as pltpu


def _affinity_kernel(mol_ref, prot_ref, wm_t_ref, b_mol_ref,
                     wp_t_ref, b_prot_ref, o_ref):
    # (tb, mol_dim) @ (mol_dim, latent) -> (tb, latent), f32 MXU accumulation.
    mol_proj = jnp.dot(mol_ref[...], wm_t_ref[...],
                       preferred_element_type=jnp.float32)
    mol_proj = jnp.maximum(mol_proj + b_mol_ref[...], 0.0)

    # (tb, prot_dim) @ (prot_dim, latent) -> (tb, latent).
    prot_proj = jnp.dot(prot_ref[...], wp_t_ref[...],
                        preferred_element_type=jnp.float32)
    prot_proj = jnp.maximum(prot_proj + b_prot_ref[...], 0.0)

    prod = mol_proj * prot_proj                     # VPU elementwise, (tb, latent)

    # Per-example inner product over latent: reduce on the (otherwise idle)
    # MXU via a ones-matmul instead of an XLU cross-lane reduce.
    ones = jnp.ones((prod.shape[1], 1), dtype=jnp.float32)
    o_ref[...] = jnp.dot(prod, ones, preferred_element_type=jnp.float32)  # (tb, 1)


def affinity_coembed_inner(mol_emb, prot_emb, w_mol, b_mol, w_prot, b_prot, *,
                           tb=None):
    """Pallas implementation of AffinityCoembedInner.forward().

    mol_emb:  (B, mol_dim)   f32
    prot_emb: (B, prot_dim)  f32
    w_mol:  (latent, mol_dim)  f32   (PyTorch nn.Linear weight layout)
    b_mol:  (latent,)          f32
    w_prot: (latent, prot_dim) f32
    b_prot: (latent,)          f32
    returns (B,) f32 -- per-example dot(ReLU(mol_proj), ReLU(prot_proj))
    """
    B, mol_dim = mol_emb.shape
    B2, prot_dim = prot_emb.shape
    assert B == B2
    latent = w_mol.shape[0]
    assert w_mol.shape == (latent, mol_dim)
    assert w_prot.shape == (latent, prot_dim)
    assert b_mol.shape == (latent,)
    assert b_prot.shape == (latent,)

    # Batch tile: multiple of 256 (fills the 256-wide MXU on v6e/v7x), default
    # 512; capped at round_up(B, 256) so small batches don't allocate oversized
    # blocks.  On single-TC parts (v5e/v6e) fewer, fatter steps is the lever;
    # on v7x an even n_tiles lets both TensorCores work under "parallel".
    if tb is None:
        tb = 512
    tb = max(256, (int(tb) // 256) * 256)
    tb = min(tb, ((B + 255) // 256) * 256)
    n_tiles = pl.cdiv(B, tb)

    # One-time, tiny layout plumbing on the parameters only (activations are
    # fed untouched in their native (B, D) layout).
    mol_c = mol_emb.astype(jnp.float32)
    prot_c = prot_emb.astype(jnp.float32)
    wm_t = jnp.transpose(w_mol.astype(jnp.float32))      # (mol_dim,  latent)
    wp_t = jnp.transpose(w_prot.astype(jnp.float32))     # (prot_dim, latent)
    b_mol_c = b_mol.astype(jnp.float32).reshape(1, latent)
    b_prot_c = b_prot.astype(jnp.float32).reshape(1, latent)

    # Explicit VMEM budget (recomputed for the chosen tb): double-buffered
    # activation/output tiles + resident (double-buffered) weights/biases +
    # live (tb, latent) intermediates, with headroom, capped under the v7x
    # 64 MiB/TC limit.
    act_bytes = 2 * 4 * tb * (mol_dim + prot_dim)                 # input tiles
    out_bytes = 2 * 4 * tb                                        # (tb, 1) tiles
    wgt_bytes = 2 * 4 * (latent * (mol_dim + prot_dim) + 2 * latent)
    live_bytes = 3 * 4 * tb * latent                              # mol/prot/prod
    vmem_bytes = act_bytes + out_bytes + wgt_bytes + live_bytes + (4 << 20)
    vmem_bytes = int(min(max(vmem_bytes, 16 << 20), 48 << 20))

    cost = pl.CostEstimate(
        flops=2 * B * latent * (mol_dim + prot_dim) + 4 * B * latent,
        transcendentals=0,
        bytes_accessed=4 * (B * (mol_dim + prot_dim)
                            + latent * (mol_dim + prot_dim + 2) + B),
    )

    out = pl.pallas_call(
        _affinity_kernel,
        out_shape=jax.ShapeDtypeStruct((B, 1), jnp.float32),
        grid_spec=pl.GridSpec(
            grid=(n_tiles,),
            in_specs=[
                pl.BlockSpec((tb, mol_dim), lambda i: (i, 0)),
                pl.BlockSpec((tb, prot_dim), lambda i: (i, 0)),
                pl.BlockSpec((mol_dim, latent), lambda i: (0, 0)),
                pl.BlockSpec((1, latent), lambda i: (0, 0)),
                pl.BlockSpec((prot_dim, latent), lambda i: (0, 0)),
                pl.BlockSpec((1, latent), lambda i: (0, 0)),
            ],
            out_specs=pl.BlockSpec((tb, 1), lambda i: (i, 0)),
        ),
        compiler_params=pltpu.CompilerParams(
            dimension_semantics=("parallel",),
            vmem_limit_bytes=vmem_bytes,
        ),
        cost_estimate=cost,
    )(mol_c, prot_c, wm_t, b_mol_c, wp_t, b_prot_c)

    # NOTE: for a ragged last block, rows past B are computed on undefined
    # input data but the masked output write discards them -- the (B, 1)
    # output only ever holds valid rows.  .squeeze() in PyTorch -> (B,).
    return out.reshape(B)


def _xavier_uniform(key, fan_out, fan_in):
    bound = jnp.sqrt(6.0 / (fan_in + fan_out))
    return jax.random.uniform(key, (fan_out, fan_in), minval=-bound, maxval=bound,
                              dtype=jnp.float32)


def _linear_bias(key, fan_in, fan_out):
    bound = 1.0 / jnp.sqrt(jnp.float32(fan_in))
    return jax.random.uniform(key, (fan_out,), minval=-bound, maxval=bound,
                              dtype=jnp.float32)


if __name__ == "__main__":
    # Small shapes consistent with the module (mol_emb_size, prot_emb_size,
    # latent_size).  B=512 with tb=256 gives a 2-step grid (both v7x TCs busy).
    B = 512
    MOL_DIM = 256
    PROT_DIM = 128
    LATENT = 256

    key = jax.random.PRNGKey(0)
    k_mol, k_prot, k_wm, k_bm, k_wp, k_bp = jax.random.split(key, 6)

    mol_emb = jax.random.normal(k_mol, (B, MOL_DIM), dtype=jnp.float32)
    prot_emb = jax.random.normal(k_prot, (B, PROT_DIM), dtype=jnp.float32)

    # Deterministic parameter init (xavier_uniform weights, default bias init).
    w_mol = _xavier_uniform(k_wm, LATENT, MOL_DIM)     # (latent, mol_dim)
    b_mol = _linear_bias(k_bm, MOL_DIM, LATENT)        # (latent,)
    w_prot = _xavier_uniform(k_wp, LATENT, PROT_DIM)   # (latent, prot_dim)
    b_prot = _linear_bias(k_bp, PROT_DIM, LATENT)      # (latent,)

    out = affinity_coembed_inner(mol_emb, prot_emb, w_mol, b_mol, w_prot, b_prot,
                                 tb=256)
    out = jax.block_until_ready(out)

    # Pure-JAX reference of the same semantics.
    mol_proj_ref = jnp.maximum(mol_emb @ w_mol.T + b_mol[None, :], 0.0)
    prot_proj_ref = jnp.maximum(prot_emb @ w_prot.T + b_prot[None, :], 0.0)
    ref = jnp.sum(mol_proj_ref * prot_proj_ref, axis=1)

    assert out.shape == (B,)
    assert jnp.allclose(out, ref, atol=1e-3, rtol=1e-4), float(
        jnp.max(jnp.abs(out - ref)))

    print("KERNEL_OK")
</pallas_src>

<mosaic_0001>
module attributes {stable_mosaic.version = 11 : i64} {
  func.func @_affinity_kernel(%arg0: i32, %arg1: memref<256x256xf32, #tpu.memory_space<vmem>>, %arg2: memref<256x128xf32, #tpu.memory_space<vmem>>, %arg3: memref<256x256xf32, #tpu.memory_space<vmem>>, %arg4: memref<1x256xf32, #tpu.memory_space<vmem>>, %arg5: memref<128x256xf32, #tpu.memory_space<vmem>>, %arg6: memref<1x256xf32, #tpu.memory_space<vmem>>, %arg7: memref<256x1xf32, #tpu.memory_space<vmem>>) attributes {dimension_semantics = [#tpu.dimension_semantics<parallel>], iteration_bounds = array<i64: 2>, scalar_prefetch = 0 : i64, scratch_operands = 0 : i64, tpu.core_type = #tpu.core_type<tc>, window_params = [{transform_indices = @transform_0, window_bounds = array<i64: 256, 256>}, {transform_indices = @transform_1, window_bounds = array<i64: 256, 128>}, {pipeline_mode = #tpu.pipeline_mode<synchronous>, transform_indices = @transform_2, window_bounds = array<i64: 256, 256>}, {pipeline_mode = #tpu.pipeline_mode<synchronous>, transform_indices = @transform_3, window_bounds = array<i64: 1, 256>}, {pipeline_mode = #tpu.pipeline_mode<synchronous>, transform_indices = @transform_4, window_bounds = array<i64: 128, 256>}, {pipeline_mode = #tpu.pipeline_mode<synchronous>, transform_indices = @transform_5, window_bounds = array<i64: 1, 256>}, {transform_indices = @transform_6, window_bounds = array<i64: 256, 1>}]} {
    %c0 = arith.constant 0 : index
    %c0_0 = arith.constant 0 : index
    %0 = vector.load %arg1[%c0, %c0_0] : memref<256x256xf32, #tpu.memory_space<vmem>>, vector<256x256xf32>
    %c0_1 = arith.constant 0 : index
    %c0_2 = arith.constant 0 : index
    %1 = vector.load %arg3[%c0_1, %c0_2] : memref<256x256xf32, #tpu.memory_space<vmem>>, vector<256x256xf32>
    %cst = arith.constant dense<0.000000e+00> : vector<256x256xf32>
    %2 = tpu.matmul %0, %1, %cst {dimension_numbers = #tpu.dot_dimension_numbers<[1], [0], [0], [1], [0, 0, 1, 1], [], []>} : vector<256x256xf32>, vector<256x256xf32>, vector<256x256xf32> -> vector<256x256xf32>
    %c0_3 = arith.constant 0 : index
    %c0_4 = arith.constant 0 : index
    %3 = vector.load %arg4[%c0_3, %c0_4] : memref<1x256xf32, #tpu.memory_space<vmem>>, vector<1x256xf32>
    %4 = vector.broadcast %3 : vector<1x256xf32> to vector<256x256xf32>
    %5 = arith.addf %2, %4 : vector<256x256xf32>
    %cst_5 = arith.constant 0.000000e+00 : f32
    %6 = vector.broadcast %cst_5 : f32 to vector<256x256xf32>
    %7 = arith.maximumf %5, %6 : vector<256x256xf32>
    %c0_6 = arith.constant 0 : index
    %c0_7 = arith.constant 0 : index
    %8 = vector.load %arg2[%c0_6, %c0_7] : memref<256x128xf32, #tpu.memory_space<vmem>>, vector<256x128xf32>
    %c0_8 = arith.constant 0 : index
    %c0_9 = arith.constant 0 : index
    %9 = vector.load %arg5[%c0_8, %c0_9] : memref<128x256xf32, #tpu.memory_space<vmem>>, vector<128x256xf32>
    %cst_10 = arith.constant dense<0.000000e+00> : vector<256x256xf32>
    %10 = tpu.matmul %8, %9, %cst_10 {dimension_numbers = #tpu.dot_dimension_numbers<[1], [0], [0], [1], [0, 0, 1, 1], [], []>} : vector<256x128xf32>, vector<128x256xf32>, vector<256x256xf32> -> vector<256x256xf32>
    %c0_11 = arith.constant 0 : index
    %c0_12 = arith.constant 0 : index
    %11 = vector.load %arg6[%c0_11, %c0_12] : memref<1x256xf32, #tpu.memory_space<vmem>>, vector<1x256xf32>
    %12 = vector.broadcast %11 : vector<1x256xf32> to vector<256x256xf32>
    %13 = arith.addf %10, %12 : vector<256x256xf32>
    %cst_13 = arith.constant 0.000000e+00 : f32
    %14 = vector.broadcast %cst_13 : f32 to vector<256x256xf32>
    %15 = arith.maximumf %13, %14 : vector<256x256xf32>
    %16 = arith.mulf %7, %15 : vector<256x256xf32>
    %cst_14 = arith.constant 1.000000e+00 : f32
    %17 = vector.broadcast %cst_14 : f32 to vector<256x1xf32>
    %cst_15 = arith.constant dense<0.000000e+00> : vector<256x1xf32>
    %18 = tpu.matmul %16, %17, %cst_15 {dimension_numbers = #tpu.dot_dimension_numbers<[1], [0], [0], [1], [0, 0, 1, 1], [], []>} : vector<256x256xf32>, vector<256x1xf32>, vector<256x1xf32> -> vector<256x1xf32>
    %c0_16 = arith.constant 0 : index
    %c0_17 = arith.constant 0 : index
    %19 = vector.load %arg7[%c0_16, %c0_17] : memref<256x1xf32, #tpu.memory_space<vmem>>, vector<256x1xf32>
    tpu.vector_store %arg7[%c0_16, %c0_17], %18 {strides = array<i32>} : memref<256x1xf32, #tpu.memory_space<vmem>>, vector<256x1xf32>,
    return
  }
  func.func @transform_0(%arg0: i32) -> (i32, i32) {
    %c0_i32 = arith.constant 0 : i32
    %c0_i32_0 = arith.constant 0 : i32
    return %arg0, %c0_i32 : i32, i32
  }
  func.func @transform_1(%arg0: i32) -> (i32, i32) {
    %c0_i32 = arith.constant 0 : i32
    %c0_i32_0 = arith.constant 0 : i32
    return %arg0, %c0_i32 : i32, i32
  }
  func.func @transform_2(%arg0: i32) -> (i32, i32) {
    %c0_i32 = arith.constant 0 : i32
    %c0_i32_0 = arith.constant 0 : i32
    %c0_i32_1 = arith.constant 0 : i32
    return %c0_i32, %c0_i32_0 : i32, i32
  }
  func.func @transform_3(%arg0: i32) -> (i32, i32) {
    %c0_i32 = arith.constant 0 : i32
    %c0_i32_0 = arith.constant 0 : i32
    %c0_i32_1 = arith.constant 0 : i32
    return %c0_i32, %c0_i32_0 : i32, i32
  }
  func.func @transform_4(%arg0: i32) -> (i32, i32) {
    %c0_i32 = arith.constant 0 : i32
    %c0_i32_0 = arith.constant 0 : i32
    %c0_i32_1 = arith.constant 0 : i32
    return %c0_i32, %c0_i32_0 : i32, i32
  }
  func.func @transform_5(%arg0: i32) -> (i32, i32) {
    %c0_i32 = arith.constant 0 : i32
    %c0_i32_0 = arith.constant 0 : i32
    %c0_i32_1 = arith.constant 0 : i32
    return %c0_i32, %c0_i32_0 : i32, i32
  }
  func.func @transform_6(%arg0: i32) -> (i32, i32) {
    %c0_i32 = arith.constant 0 : i32
    %c0_i32_0 = arith.constant 0 : i32
    return %arg0, %c0_i32 : i32, i32
  }
}

</mosaic_0001>

<llo_original>
// kernel: tpu_custom_call.1
$region0: #{tpu_custom_call.1}
  #allocation0 [shape = 'u32[]', space=smem, size = 0x4, offset = 0x4, fixed_abs, tag = 'smem constant byte address 0x4 - core index']
  #allocation1 [shape = 'u32[144,128]{1,0:T(1,128)}', space=vmem, size = 0x12000, scoped, tag = 'internal scratch']
  %s0 = inlined_call_operand.hbm [shape: f32[512,256], index: 0, kind: input, shape index: {}]
  %s1 = inlined_call_operand.hbm [shape: f32[512,128], index: 1, kind: input, shape index: {}]
  %s2 = inlined_call_operand.hbm [shape: f32[256,256], index: 2, kind: input, shape index: {}]
  %s3 = inlined_call_operand.vmem [shape: f32[1,256], index: 3, kind: input, shape index: {}]
  %s4 = inlined_call_operand.hbm [shape: f32[128,256], index: 4, kind: input, shape index: {}]
  %s5 = inlined_call_operand.vmem [shape: f32[1,256], index: 5, kind: input, shape index: {}]
  %s6 = inlined_call_operand.vmem [shape: f32[512,1], index: 6, kind: output, shape index: {}]
  %s7 = sld [smem:[#allocation0]]
  $region73: #{tpu_custom_call.1} parent=0
    _
  %s9 = ssub.s32 1, %s7
  %s10 = scalar_select 0, %s9, %s7
  $region1: #{tpu_custom_call.1} parent=0
    #allocation2 [shape = 'u8[524288]{0}', space=vmem, size = 0x80000, scoped, tag = 'input window, operand 0']
    #allocation3 [shape = 's32[2]{0}', space=sflag, size = 0x8, scoped, tag = 'scoped memory for tpu_custom_call.1']
    #allocation4 [shape = 'u8[262144]{0}', space=vmem, size = 0x40000, scoped, tag = 'input window, operand 1']
    #allocation5 [shape = 's32[2]{0}', space=sflag, size = 0x8, scoped, tag = 'scoped memory for tpu_custom_call.1']
    #allocation6 [shape = 'u8[262144]{0}', space=vmem, size = 0x40000, scoped, tag = 'input window, operand 2, single buffered']
    #allocation7 [shape = 'u8[131072]{0}', space=vmem, size = 0x20000, scoped, tag = 'input window, operand 4, single buffered']
    #allocation8 [shape = 's32[1]{0}', space=sflag, size = 0x4, scoped, tag = 'scoped memory for tpu_custom_call.1']
    %11 = vsyncpa [#allocation3], 0
    %s12 = scalar_lea.sflag [#allocation3], 1
    %13 = vsyncpa %s12, 0
    %14 = vsyncpa [#allocation5], 0
    %s15 = scalar_lea.sflag [#allocation5], 1
    %16 = vsyncpa %s15, 0
    %17 = vsyncpa [#allocation8], 0
    loop: start=0, step=1, limit=4
    $region2: #{tpu_custom_call.1} parent=1 // loop_pre_header
      _
    $region3: #{tpu_custom_call.1} parent=1 // loop_header
      %s19 = sphi 0, %s23
      %p20 = scmp.ge.s32.totalorder %s19, 4
      %s29 = sphi 0, %s31
      %s32 = sphi 0, %s29
      %s33 = sphi 0, %s32
      %s49 = sphi 0, %s33
      %s55 = sphi 0, %s57
      %s58 = sphi 0, %s55
      %s59 = sphi 0, %s58
      %s75 = sphi 0, %s59
      %s79 = sphi 0, %s79
      %s81 = sphi 0, %s79
      %s82 = sphi 0, %s81
      %s96 = sphi 0, %s82
      %s100 = sphi 0, %s100
      %s102 = sphi 0, %s100
      %s103 = sphi 0, %s102
      %s117 = sphi 0, %s103
      %s121 = sphi 0, %s121
      %s123 = sphi 0, %s121
      %s124 = sphi 0, %s123
      %s138 = sphi 0, %s124
      %s142 = sphi 0, %s142
      %s144 = sphi 0, %s142
      %s145 = sphi 0, %s144
      %s159 = sphi 0, %s145
      %s165 = sphi 0, %s167
      %s168 = sphi 0, %s165
      %s169 = sphi 0, %s168
      %s185 = sphi 0, %s169
    $region4: #{tpu_custom_call.1} parent=1 // loop_header_branch
      %22 = sbr.rel (%p20) target = $region8
    $region5: #{tpu_custom_call.1} parent=1 // loop_body
      %s24 = ssub.s32 %s19, 1
      %s25 = ssub.s32 %s19, 2
      %s26 = sadd.s32 %s19, 1
      %s27 = ssub.s32 %s19, %s26
      %p28 = scmp.eq.s32.totalorder %s27, 0
      %s30 = sadd.s32 %s29, 1
      %s31 = scalar_select %p28, %s29, %s30
      %p34 = pneg %p28
      %p35 = scmp.eq.s32.totalorder %s19, 1
      %p36 = por %p34, %p35
      %p37 = scmp.ne.s32.totalorder %s29, %s32
      %p38 = scmp.eq.s32.totalorder %s19, 0
      %p39 = por %p37, %p38
      %p40 = scmp.ne.s32.totalorder %s29, %s32
      %p41 = scmp.eq.s32.totalorder %s24, 1
      %p42 = por %p40, %p41
      %p43 = scmp.ne.s32.totalorder %s32, %s33
      %p44 = scmp.eq.s32.totalorder %s24, 0
      %p45 = por %p43, %p44
      %p46 = scmp.ne.s32.totalorder %s32, %s33
      %p47 = scmp.eq.s32.totalorder %s25, 1
      %p48 = por %p46, %p47
      %p50 = scmp.ne.s32.totalorder %s33, %s49
      %p51 = scmp.eq.s32.totalorder %s25, 0
      %p52 = por %p50, %p51
      %s53 = ssub.s32 %s19, %s26
      %p54 = scmp.eq.s32.totalorder %s53, 0
      %s56 = sadd.s32 %s55, 1
      %s57 = scalar_select %p54, %s55, %s56
      %p60 = pneg %p54
      %p61 = scmp.eq.s32.totalorder %s19, 1
      %p62 = por %p60, %p61
      %p63 = scmp.ne.s32.totalorder %s55, %s58
      %p64 = scmp.eq.s32.totalorder %s19, 0
      %p65 = por %p63, %p64
      %p66 = scmp.ne.s32.totalorder %s55, %s58
      %p67 = scmp.eq.s32.totalorder %s24, 1
      %p68 = por %p66, %p67
      %p69 = scmp.ne.s32.totalorder %s58, %s59
      %p70 = scmp.eq.s32.totalorder %s24, 0
      %p71 = por %p69, %p70
      %p72 = scmp.ne.s32.totalorder %s58, %s59
      %p73 = scmp.eq.s32.totalorder %s25, 1
      %p74 = por %p72, %p73
      %p76 = scmp.ne.s32.totalorder %s59, %s75
      %p77 = scmp.eq.s32.totalorder %s25, 0
      %p78 = por %p76, %p77
      %s80 = sadd.s32 %s79, 1
      %p83 = scmp.eq.s32.totalorder %s19, 1
      %p84 = scmp.ne.s32.totalorder %s79, %s81
      %p85 = scmp.eq.s32.totalorder %s19, 0
      %p86 = por %p84, %p85
      %p87 = scmp.ne.s32.totalorder %s79, %s81
      %p88 = scmp.eq.s32.totalorder %s24, 1
      %p89 = por %p87, %p88
      %p90 = scmp.ne.s32.totalorder %s81, %s82
      %p91 = scmp.eq.s32.totalorder %s24, 0
      %p92 = por %p90, %p91
      %p93 = scmp.ne.s32.totalorder %s81, %s82
      %p94 = scmp.eq.s32.totalorder %s25, 1
      %p95 = por %p93, %p94
      %p97 = scmp.ne.s32.totalorder %s82, %s96
      %p98 = scmp.eq.s32.totalorder %s25, 0
      %p99 = por %p97, %p98
      %s101 = sadd.s32 %s100, 1
      %p104 = scmp.eq.s32.totalorder %s19, 1
      %p105 = scmp.ne.s32.totalorder %s100, %s102
      %p106 = scmp.eq.s32.totalorder %s19, 0
      %p107 = por %p105, %p106
      %p108 = scmp.ne.s32.totalorder %s100, %s102
      %p109 = scmp.eq.s32.totalorder %s24, 1
      %p110 = por %p108, %p109
      %p111 = scmp.ne.s32.totalorder %s102, %s103
      %p112 = scmp.eq.s32.totalorder %s24, 0
      %p113 = por %p111, %p112
      %p114 = scmp.ne.s32.totalorder %s102, %s103
      %p115 = scmp.eq.s32.totalorder %s25, 1
      %p116 = por %p114, %p115
      %p118 = scmp.ne.s32.totalorder %s103, %s117
      %p119 = scmp.eq.s32.totalorder %s25, 0
      %p120 = por %p118, %p119
      %s122 = sadd.s32 %s121, 1
      %p125 = scmp.eq.s32.totalorder %s19, 1
      %p126 = scmp.ne.s32.totalorder %s121, %s123
      %p127 = scmp.eq.s32.totalorder %s19, 0
      %p128 = por %p126, %p127
      %p129 = scmp.ne.s32.totalorder %s121, %s123
      %p130 = scmp.eq.s32.totalorder %s24, 1
      %p131 = por %p129, %p130
      %p132 = scmp.ne.s32.totalorder %s123, %s124
      %p133 = scmp.eq.s32.totalorder %s24, 0
      %p134 = por %p132, %p133
      %p135 = scmp.ne.s32.totalorder %s123, %s124
      %p136 = scmp.eq.s32.totalorder %s25, 1
      %p137 = por %p135, %p136
      %p139 = scmp.ne.s32.totalorder %s124, %s138
      %p140 = scmp.eq.s32.totalorder %s25, 0
      %p141 = por %p139, %p140
      %s143 = sadd.s32 %s142, 1
      %p146 = scmp.eq.s32.totalorder %s19, 1
      %p147 = scmp.ne.s32.totalorder %s142, %s144
      %p148 = scmp.eq.s32.totalorder %s19, 0
      %p149 = por %p147, %p148
      %p150 = scmp.ne.s32.totalorder %s142, %s144
      %p151 = scmp.eq.s32.totalorder %s24, 1
      %p152 = por %p150, %p151
      %p153 = scmp.ne.s32.totalorder %s144, %s145
      %p154 = scmp.eq.s32.totalorder %s24, 0
      %p155 = por %p153, %p154
      %p156 = scmp.ne.s32.totalorder %s144, %s145
      %p157 = scmp.eq.s32.totalorder %s25, 1
      %p158 = por %p156, %p157
      %p160 = scmp.ne.s32.totalorder %s145, %s159
      %p161 = scmp.eq.s32.totalorder %s25, 0
      %p162 = por %p160, %p161
      %s163 = ssub.s32 %s19, %s26
      %p164 = scmp.eq.s32.totalorder %s163, 0
      %s166 = sadd.s32 %s165, 1
      %s167 = scalar_select %p164, %s165, %s166
      %p170 = pneg %p164
      %p171 = scmp.eq.s32.totalorder %s19, 1
      %p172 = por %p170, %p171
      %p173 = scmp.ne.s32.totalorder %s165, %s168
      %p174 = scmp.eq.s32.totalorder %s19, 0
      %p175 = por %p173, %p174
      %p176 = scmp.ne.s32.totalorder %s165, %s168
      %p177 = scmp.eq.s32.totalorder %s24, 1
      %p178 = por %p176, %p177
      %p179 = scmp.ne.s32.totalorder %s168, %s169
      %p180 = scmp.eq.s32.totalorder %s24, 0
      %p181 = por %p179, %p180
      %p182 = scmp.ne.s32.totalorder %s168, %s169
      %p183 = scmp.eq.s32.totalorder %s25, 1
      %p184 = por %p182, %p183
      %p186 = scmp.ne.s32.totalorder %s169, %s185
      %p187 = scmp.eq.s32.totalorder %s25, 0
      %p188 = por %p186, %p187
      %p189 = scmp.le.s32.totalorder 1, %s19
      %p190 = scmp.lt.s32.totalorder %s19, 3
      %p191 = pnand %p189, %p190
      %p192 = pneg %p191
      // Predicated region
      $region9: #{tpu_custom_call.1} parent=5 // pred_check
        _
      $region10: #{tpu_custom_call.1} parent=5 // pred_check_branch
        %194 = sbr.rel (%p191) target = $region12
      $region11: #{tpu_custom_call.1} parent=5 // pred_region
        %s195 = ssub.s32 %s19, 1
        // Predicated region
        $region13: #{tpu_custom_call.1} parent=11 // pred_check
          %p196 = pneg %p92
        $region14: #{tpu_custom_call.1} parent=11 // pred_check_branch
          %198 = sbr.rel (%p196) target = $region16
        $region15: #{tpu_custom_call.1} parent=11 // pred_region
          %s200 = ssub.s32 8192, 8192
          %201 = vsyncadd [#allocation5], %s200
          %s202 = sshll.u32 [#allocation6], 4
          %s203 = int_to_ptr.vmem [resolvable:$true] %s202
          %208 = dma.hbm_to_vmem [thread:$0]  %s2, 8192, %s203, [#allocation5], 256, 256, 16
        $region16: #{tpu_custom_call.1} parent=11 // pred_fallthru
          _
        // Predicated region
        $region17: #{tpu_custom_call.1} parent=11 // pred_check
          %p209 = pneg %p113
        $region18: #{tpu_custom_call.1} parent=11 // pred_check_branch
          %211 = sbr.rel (%p209) target = $region20
        $region19: #{tpu_custom_call.1} parent=11 // pred_region
          _
        $region20: #{tpu_custom_call.1} parent=11 // pred_fallthru
          _
        // Predicated region
        $region21: #{tpu_custom_call.1} parent=11 // pred_check
          %p212 = pneg %p134
        $region22: #{tpu_custom_call.1} parent=11 // pred_check_branch
          %214 = sbr.rel (%p212) target = $region24
        $region23: #{tpu_custom_call.1} parent=11 // pred_region
          %s216 = ssub.s32 4096, 4096
          %217 = vsyncadd [#allocation8], %s216
          %s218 = sshll.u32 [#allocation7], 4
          %s219 = int_to_ptr.vmem [resolvable:$true] %s218
          %224 = dma.hbm_to_vmem [thread:$0]  %s4, 4096, %s219, [#allocation8], 256, 256, 16
        $region24: #{tpu_custom_call.1} parent=11 // pred_fallthru
          _
        // Predicated region
        $region25: #{tpu_custom_call.1} parent=11 // pred_check
          %p225 = pneg %p155
        $region26: #{tpu_custom_call.1} parent=11 // pred_check_branch
          %227 = sbr.rel (%p225) target = $region28
        $region27: #{tpu_custom_call.1} parent=11 // pred_region
          _
        $region28: #{tpu_custom_call.1} parent=11 // pred_fallthru
          _
      $region12: #{tpu_custom_call.1} parent=5 // pred_fallthru
        _
      %p228 = scmp.lt.s32.totalorder %s19, 2
      // Predicated region
      $region29: #{tpu_custom_call.1} parent=5 // pred_check
        %p229 = pneg %p228
      $region30: #{tpu_custom_call.1} parent=5 // pred_check_branch
        %231 = sbr.rel (%p229) target = $region32
      $region31: #{tpu_custom_call.1} parent=5 // pred_region
        // Predicated region
        $region33: #{tpu_custom_call.1} parent=31 // pred_check
          %p232 = pneg %p39
        $region34: #{tpu_custom_call.1} parent=31 // pred_check_branch
          %234 = sbr.rel (%p232) target = $region36
        $region35: #{tpu_custom_call.1} parent=31 // pred_region
          %s235 = sand.u32 %s29, 1
          %s236 = scalar_lea.sflag [#allocation3], %s235
          %s237 = sand.u32 %s29, 1
          %s238 = smul.addr %s237, 512
          %s239 = scalar_lea.vmem [#allocation2], %s238
          %s240 = smul.u32 32, %s19
          %s242 = ssub.s32 8192, 8192
          %243 = vsyncadd %s236, %s242
          %s244 = smul.addr %s240, 2
          %s245 = smul.addr %s244, 128
          %s246 = scalar_lea.hbm %s0, %s245
          %s247 = sshll.u32 %s239, 4
          %s248 = int_to_ptr.vmem [resolvable:$true] %s247
          %253 = dma.hbm_to_vmem [thread:$0]  %s246, 8192, %s248, %s236, 256, 256, 16
        $region36: #{tpu_custom_call.1} parent=31 // pred_fallthru
          _
        // Predicated region
        $region37: #{tpu_custom_call.1} parent=31 // pred_check
          %p254 = pneg %p65
        $region38: #{tpu_custom_call.1} parent=31 // pred_check_branch
          %256 = sbr.rel (%p254) target = $region40
        $region39: #{tpu_custom_call.1} parent=31 // pred_region
          %s257 = sand.u32 %s19, 1
          %s258 = scalar_lea.sflag [#allocation5], %s257
          %s259 = sand.u32 %s55, 1
          %s260 = smul.addr %s259, 256
          %s261 = scalar_lea.vmem [#allocation4], %s260
          %s262 = smul.u32 32, %s19
          %s264 = ssub.s32 4096, 4096
          %265 = vsyncadd %s258, %s264
          %s266 = smul.addr %s262, 128
          %s267 = scalar_lea.hbm %s1, %s266
          %s268 = sshll.u32 %s261, 4
          %s269 = int_to_ptr.vmem [resolvable:$true] %s268
          %274 = dma.hbm_to_vmem [thread:$0]  %s267, 4096, %s269, %s258, 128, 128, 8
        $region40: #{tpu_custom_call.1} parent=31 // pred_fallthru
          _
      $region32: #{tpu_custom_call.1} parent=5 // pred_fallthru
        _
      %p275 = scmp.le.s32.totalorder 1, %s19
      %p276 = scmp.lt.s32.totalorder %s19, 3
      %p277 = pnand %p275, %p276
      %p278 = pneg %p277
      // Predicated region
      $region41: #{tpu_custom_call.1} parent=5 // pred_check
        _
      $region42: #{tpu_custom_call.1} parent=5 // pred_check_branch
        %280 = sbr.rel (%p277) target = $region44
      $region43: #{tpu_custom_call.1} parent=5 // pred_region
        %s281 = ssub.s32 %s19, 1
        %s282 = sand.u32 %s32, 1
        %s283 = scalar_lea.sflag [#allocation3], %s282
        %s284 = sand.u32 %s32, 1
        %s285 = smul.addr %s284, 512
        %s286 = scalar_lea.vmem [#allocation2], %s285
        // Predicated region
        $region45: #{tpu_custom_call.1} parent=43 // pred_check
          %p287 = pneg %p45
        $region46: #{tpu_custom_call.1} parent=43 // pred_check_branch
          %289 = sbr.rel (%p287) target = $region48
        $region47: #{tpu_custom_call.1} parent=43 // pred_region
          %290 = dma.done %s283, 8192
        $region48: #{tpu_custom_call.1} parent=43 // pred_fallthru
          _
        %s291 = sand.u32 %s24, 1
        %s292 = scalar_lea.sflag [#allocation5], %s291
        %s293 = sand.u32 %s58, 1
        %s294 = smul.addr %s293, 256
        %s295 = scalar_lea.vmem [#allocation4], %s294
        // Predicated region
        $region49: #{tpu_custom_call.1} parent=43 // pred_check
          %p296 = pneg %p71
        $region50: #{tpu_custom_call.1} parent=43 // pred_check_branch
          %298 = sbr.rel (%p296) target = $region52
        $region51: #{tpu_custom_call.1} parent=43 // pred_region
          %299 = dma.done %s292, 4096
        $region52: #{tpu_custom_call.1} parent=43 // pred_fallthru
          _
        // Predicated region
        $region53: #{tpu_custom_call.1} parent=43 // pred_check
          %p300 = pneg %p92
        $region54: #{tpu_custom_call.1} parent=43 // pred_check_branch
          %302 = sbr.rel (%p300) target = $region56
        $region55: #{tpu_custom_call.1} parent=43 // pred_region
          %303 = dma.done [#allocation5], 8192
        $region56: #{tpu_custom_call.1} parent=43 // pred_fallthru
          _
        // Predicated region
        $region57: #{tpu_custom_call.1} parent=43 // pred_check
          %p304 = pneg %p134
        $region58: #{tpu_custom_call.1} parent=43 // pred_check_branch
          %306 = sbr.rel (%p304) target = $region60
        $region59: #{tpu_custom_call.1} parent=43 // pred_region
          %307 = dma.done [#allocation8], 4096
        $region60: #{tpu_custom_call.1} parent=43 // pred_fallthru
          _
        %s308 = sand.u32 %s32, 1
        %s309 = scalar_lea.sflag [#allocation3], %s308
        %s310 = sand.u32 %s32, 1
        %s311 = smul.addr %s310, 512
        %s312 = scalar_lea.vmem [#allocation2], %s311
        %p313 = pneg %p45
        %p314 = pneg %p42
        %s315 = sand.u32 %s24, 1
        %s316 = scalar_lea.sflag [#allocation5], %s315
        %s317 = sand.u32 %s58, 1
        %s318 = smul.addr %s317, 256
        %s319 = scalar_lea.vmem [#allocation4], %s318
        %p320 = pneg %p71
        %p321 = pneg %p68
        %p322 = pneg %p92
        %p323 = pneg %p89
        %p324 = pneg %p113
        %p325 = pneg %p110
        %p326 = pneg %p134
        %p327 = pneg %p131
        %p328 = pneg %p155
        %p329 = pneg %p152
        %p330 = pneg %p181
        %p331 = pneg %p178
        %s332 = smul.u32 32, %s24
        %p333 = scmp.lt.s32.totalorder %s332, 63
        %s334 = scalar_select %p333, %s332, 63
        %s335 = smul.addr %s334, 8
        %s336 = scalar_lea.vmem %s6, %s335
        %s337 = smul.u32 32, %s24
        %s338 = smul.u32 32, %s24
        %s339 = smul.u32 32, %s24
        %p340 = scmp.lt.s32.totalorder %s339, 63
        %s341 = scalar_select %p340, %s339, 63
        %s342 = smul.addr %s341, 8
        %s343 = scalar_lea.vmem %s6, %s342
        %s344 = smul.u32 32, %s24
        %v345 = vld [vmem:[%s286] sm:$0xff]
        %v346 = vld [vmem:[%s286 + $0x8] sm:$0xff]
        %v347 = vld [vmem:[%s286 + $0x10] sm:$0xff]
        %v348 = vld [vmem:[%s286 + $0x18] sm:$0xff]
        %v349 = vld [vmem:[%s286 + $0x20] sm:$0xff]
        %v350 = vld [vmem:[%s286 + $0x28] sm:$0xff]
        %v351 = vld [vmem:[%s286 + $0x30] sm:$0xff]
        %v352 = vld [vmem:[%s286 + $0x38] sm:$0xff]
        %v353 = vld [vmem:[%s286 + $0x40] sm:$0xff]
        %v354 = vld [vmem:[%s286 + $0x48] sm:$0xff]
        %v355 = vld [vmem:[%s286 + $0x50] sm:$0xff]
        %v356 = vld [vmem:[%s286 + $0x58] sm:$0xff]
        %v357 = vld [vmem:[%s286 + $0x60] sm:$0xff]
        %v358 = vld [vmem:[%s286 + $0x68] sm:$0xff]
        %v359 = vld [vmem:[%s286 + $0x70] sm:$0xff]
        %v360 = vld [vmem:[%s286 + $0x78] sm:$0xff]
        %v361 = vld [vmem:[%s286 + $0x80] sm:$0xff]
        %v362 = vld [vmem:[%s286 + $0x88] sm:$0xff]
        %v363 = vld [vmem:[%s286 + $0x90] sm:$0xff]
        %v364 = vld [vmem:[%s286 + $0x98] sm:$0xff]
        %v365 = vld [vmem:[%s286 + $0xa0] sm:$0xff]
        %v366 = vld [vmem:[%s286 + $0xa8] sm:$0xff]
        %v367 = vld [vmem:[%s286 + $0xb0] sm:$0xff]
        %v368 = vld [vmem:[%s286 + $0xb8] sm:$0xff]
        %v369 = vld [vmem:[%s286 + $0xc0] sm:$0xff]
        %v370 = vld [vmem:[%s286 + $0xc8] sm:$0xff]
        %v371 = vld [vmem:[%s286 + $0xd0] sm:$0xff]
        %v372 = vld [vmem:[%s286 + $0xd8] sm:$0xff]
        %v373 = vld [vmem:[%s286 + $0xe0] sm:$0xff]
        %v374 = vld [vmem:[%s286 + $0xe8] sm:$0xff]
        %v375 = vld [vmem:[%s286 + $0xf0] sm:$0xff]
        %v376 = vld [vmem:[%s286 + $0xf8] sm:$0xff]
        %v377 = vld [vmem:[%s286 + $0x100] sm:$0xff]
        %v378 = vld [vmem:[%s286 + $0x108] sm:$0xff]
        %v379 = vld [vmem:[%s286 + $0x110] sm:$0xff]
        %v380 = vld [vmem:[%s286 + $0x118] sm:$0xff]
        %v381 = vld [vmem:[%s286 + $0x120] sm:$0xff]
        %v382 = vld [vmem:[%s286 + $0x128] sm:$0xff]
        %v383 = vld [vmem:[%s286 + $0x130] sm:$0xff]
        %v384 = vld [vmem:[%s286 + $0x138] sm:$0xff]
        %v385 = vld [vmem:[%s286 + $0x140] sm:$0xff]
        %v386 = vld [vmem:[%s286 + $0x148] sm:$0xff]
        %v387 = vld [vmem:[%s286 + $0x150] sm:$0xff]
        %v388 = vld [vmem:[%s286 + $0x158] sm:$0xff]
        %v389 = vld [vmem:[%s286 + $0x160] sm:$0xff]
        %v390 = vld [vmem:[%s286 + $0x168] sm:$0xff]
        %v391 = vld [vmem:[%s286 + $0x170] sm:$0xff]
        %v392 = vld [vmem:[%s286 + $0x178] sm:$0xff]
        %v393 = vld [vmem:[%s286 + $0x180] sm:$0xff]
        %v394 = vld [vmem:[%s286 + $0x188] sm:$0xff]
        %v395 = vld [vmem:[%s286 + $0x190] sm:$0xff]
        %v396 = vld [vmem:[%s286 + $0x198] sm:$0xff]
        %v397 = vld [vmem:[%s286 + $0x1a0] sm:$0xff]
        %v398 = vld [vmem:[%s286 + $0x1a8] sm:$0xff]
        %v399 = vld [vmem:[%s286 + $0x1b0] sm:$0xff]
        %v400 = vld [vmem:[%s286 + $0x1b8] sm:$0xff]
        %v401 = vld [vmem:[%s286 + $0x1c0] sm:$0xff]
        %v402 = vld [vmem:[%s286 + $0x1c8] sm:$0xff]
        %v403 = vld [vmem:[%s286 + $0x1d0] sm:$0xff]
        %v404 = vld [vmem:[%s286 + $0x1d8] sm:$0xff]
        %v405 = vld [vmem:[%s286 + $0x1e0] sm:$0xff]
        %v406 = vld [vmem:[%s286 + $0x1e8] sm:$0xff]
        %v407 = vld [vmem:[%s286 + $0x1f0] sm:$0xff]
        %v408 = vld [vmem:[%s286 + $0x1f8] sm:$0xff]
        %v409 = vld [vmem:[#allocation6] sm:$0xff]
        %v410 = vld [vmem:[#allocation6 + $0x8] sm:$0xff]
        %v411 = vld [vmem:[#allocation6 + $0x10] sm:$0xff]
        %v412 = vld [vmem:[#allocation6 + $0x18] sm:$0xff]
        %v413 = vld [vmem:[#allocation6 + $0x20] sm:$0xff]
        %v414 = vld [vmem:[#allocation6 + $0x28] sm:$0xff]
        %v415 = vld [vmem:[#allocation6 + $0x30] sm:$0xff]
        %v416 = vld [vmem:[#allocation6 + $0x38] sm:$0xff]
        %v417 = vld [vmem:[#allocation6 + $0x40] sm:$0xff]
        %v418 = vld [vmem:[#allocation6 + $0x48] sm:$0xff]
        %v419 = vld [vmem:[#allocation6 + $0x50] sm:$0xff]
        %v420 = vld [vmem:[#allocation6 + $0x58] sm:$0xff]
        %v421 = vld [vmem:[#allocation6 + $0x60] sm:$0xff]
        %v422 = vld [vmem:[#allocation6 + $0x68] sm:$0xff]
        %v423 = vld [vmem:[#allocation6 + $0x70] sm:$0xff]
        %v424 = vld [vmem:[#allocation6 + $0x78] sm:$0xff]
        %v425 = vld [vmem:[#allocation6 + $0x80] sm:$0xff]
        %v426 = vld [vmem:[#allocation6 + $0x88] sm:$0xff]
        %v427 = vld [vmem:[#allocation6 + $0x90] sm:$0xff]
        %v428 = vld [vmem:[#allocation6 + $0x98] sm:$0xff]
        %v429 = vld [vmem:[#allocation6 + $0xa0] sm:$0xff]
        %v430 = vld [vmem:[#allocation6 + $0xa8] sm:$0xff]
        %v431 = vld [vmem:[#allocation6 + $0xb0] sm:$0xff]
        %v432 = vld [vmem:[#allocation6 + $0xb8] sm:$0xff]
        %v433 = vld [vmem:[#allocation6 + $0xc0] sm:$0xff]
        %v434 = vld [vmem:[#allocation6 + $0xc8] sm:$0xff]
        %v435 = vld [vmem:[#allocation6 + $0xd0] sm:$0xff]
        %v436 = vld [vmem:[#allocation6 + $0xd8] sm:$0xff]
        %v437 = vld [vmem:[#allocation6 + $0xe0] sm:$0xff]
        %v438 = vld [vmem:[#allocation6 + $0xe8] sm:$0xff]
        %v439 = vld [vmem:[#allocation6 + $0xf0] sm:$0xff]
        %v440 = vld [vmem:[#allocation6 + $0xf8] sm:$0xff]
        %v441 = vld [vmem:[#allocation6 + $0x100] sm:$0xff]
        %v442 = vld [vmem:[#allocation6 + $0x108] sm:$0xff]
        %v443 = vld [vmem:[#allocation6 + $0x110] sm:$0xff]
        %v444 = vld [vmem:[#allocation6 + $0x118] sm:$0xff]
        %v445 = vld [vmem:[#allocation6 + $0x120] sm:$0xff]
        %v446 = vld [vmem:[#allocation6 + $0x128] sm:$0xff]
        %v447 = vld [vmem:[#allocation6 + $0x130] sm:$0xff]
        %v448 = vld [vmem:[#allocation6 + $0x138] sm:$0xff]
        %v449 = vld [vmem:[#allocation6 + $0x140] sm:$0xff]
        %v450 = vld [vmem:[#allocation6 + $0x148] sm:$0xff]
        %v451 = vld [vmem:[#allocation6 + $0x150] sm:$0xff]
        %v452 = vld [vmem:[#allocation6 + $0x158] sm:$0xff]
        %v453 = vld [vmem:[#allocation6 + $0x160] sm:$0xff]
        %v454 = vld [vmem:[#allocation6 + $0x168] sm:$0xff]
        %v455 = vld [vmem:[#allocation6 + $0x170] sm:$0xff]
        %v456 = vld [vmem:[#allocation6 + $0x178] sm:$0xff]
        %v457 = vld [vmem:[#allocation6 + $0x180] sm:$0xff]
        %v458 = vld [vmem:[#allocation6 + $0x188] sm:$0xff]
        %v459 = vld [vmem:[#allocation6 + $0x190] sm:$0xff]
        %v460 = vld [vmem:[#allocation6 + $0x198] sm:$0xff]
        %v461 = vld [vmem:[#allocation6 + $0x1a0] sm:$0xff]
        %v462 = vld [vmem:[#allocation6 + $0x1a8] sm:$0xff]
        %v463 = vld [vmem:[#allocation6 + $0x1b0] sm:$0xff]
        %v464 = vld [vmem:[#allocation6 + $0x1b8] sm:$0xff]
        %v465 = vld [vmem:[#allocation6 + $0x1c0] sm:$0xff]
        %v466 = vld [vmem:[#allocation6 + $0x1c8] sm:$0xff]
        %v467 = vld [vmem:[#allocation6 + $0x1d0] sm:$0xff]
        %v468 = vld [vmem:[#allocation6 + $0x1d8] sm:$0xff]
        %v469 = vld [vmem:[#allocation6 + $0x1e0] sm:$0xff]
        %v470 = vld [vmem:[#allocation6 + $0x1e8] sm:$0xff]
        %v471 = vld [vmem:[#allocation6 + $0x1f0] sm:$0xff]
        %v472 = vld [vmem:[#allocation6 + $0x1f8] sm:$0xff]
        %v473 = vld [vmem:[%s3] sm:$0x3]
        %v475 = vlaneseq
        %v476 = vshrl.u32 %v475, 7
        %v477 = vsub.s32 0, %v476
        %v478 = vrot.slane %v473, %v477
        %v479 = vlaneseq
        %v480 = vshrl.u32 %v479, 7
        %v481 = vsub.s32 1, %v480
        %v482 = vrot.slane %v473, %v481
        %485 = vmatprep.subr.mxu0 %v440
        %486 = vmatpush1.msra.mxu0 %v439
        %487 = vmatprep.subr.mxu0 %v438
        %488 = vmatpush1.msra.mxu0 %v437
        %489 = vmatprep.subr.mxu0 %v436
        %490 = vmatpush1.msra.mxu0 %v435
        %491 = vmatprep.subr.mxu0 %v434
        %492 = vmatpush1.msra.mxu0 %v433
        %493 = vmatprep.subr.mxu0 %v432
        %494 = vmatpush1.msra.mxu0 %v431
        %495 = vmatprep.subr.mxu0 %v430
        %496 = vmatpush1.msra.mxu0 %v429
        %497 = vmatprep.subr.mxu0 %v428
        %498 = vmatpush1.msra.mxu0 %v427
        %499 = vmatprep.subr.mxu0 %v426
        %500 = vmatpush1.msra.mxu0 %v425
        %501 = vmatprep.subr.mxu0 %v424
        %502 = vmatpush1.msra.mxu0 %v423
        %503 = vmatprep.subr.mxu0 %v422
        %504 = vmatpush1.msra.mxu0 %v421
        %505 = vmatprep.subr.mxu0 %v420
        %506 = vmatpush1.msra.mxu0 %v419
        %507 = vmatprep.subr.mxu0 %v418
        %508 = vmatpush1.msra.mxu0 %v417
        %509 = vmatprep.subr.mxu0 %v416
        %510 = vmatpush1.msra.mxu0 %v415
        %511 = vmatprep.subr.mxu0 %v414
        %512 = vmatpush1.msra.mxu0 %v413
        %513 = vmatprep.subr.mxu0 %v412
        %514 = vmatpush1.msra.mxu0 %v411
        %515 = vmatprep.subr.mxu0 %v410
        %516 = vmatpush1.msra.mxu0 %v409
        %517 = vmatprep.subr.mxu0 %v472
        %518 = vmatpush2.msra.mxu0 %v471
        %519 = vmatprep.subr.mxu0 %v470
        %520 = vmatpush2.msra.mxu0 %v469
        %521 = vmatprep.subr.mxu0 %v468
        %522 = vmatpush2.msra.mxu0 %v467
        %523 = vmatprep.subr.mxu0 %v466
        %524 = vmatpush2.msra.mxu0 %v465
        %525 = vmatprep.subr.mxu0 %v464
        %526 = vmatpush2.msra.mxu0 %v463
        %527 = vmatprep.subr.mxu0 %v462
        %528 = vmatpush2.msra.mxu0 %v461
        %529 = vmatprep.subr.mxu0 %v460
        %530 = vmatpush2.msra.mxu0 %v459
        %531 = vmatprep.subr.mxu0 %v458
        %532 = vmatpush2.msra.mxu0 %v457
        %533 = vmatprep.subr.mxu0 %v456
        %534 = vmatpush2.msra.mxu0 %v455
        %535 = vmatprep.subr.mxu0 %v454
        %536 = vmatpush2.msra.mxu0 %v453
        %537 = vmatprep.subr.mxu0 %v452
        %538 = vmatpush2.msra.mxu0 %v451
        %539 = vmatprep.subr.mxu0 %v450
        %540 = vmatpush2.msra.mxu0 %v449
        %541 = vmatprep.subr.mxu0 %v448
        %542 = vmatpush2.msra.mxu0 %v447
        %543 = vmatprep.subr.mxu0 %v446
        %544 = vmatpush2.msra.mxu0 %v445
        %545 = vmatprep.subr.mxu0 %v444
        %546 = vmatpush2.msra.mxu0 %v443
        %547 = vmatprep.subr.mxu0 %v442
        %548 = vmatpush2.msra.mxu0 %v441
        %549 = vmatprep.mubr.f32.mxu0 %v346
        %550 = vmatmul.mubr.f32.gmra.mxu0 %v345
        %v551 = vpop.f32.mrf.mxu0
        %v552 = vadd.f32 %v478, %v551
        %v553 = vpop.f32.mrf.mxu0
        %v554 = vadd.f32 %v482, %v553
        %555 = vmatprep.mubr.f32.mxu0 %v348
        %556 = vmatmul.mubr.f32.gmra.mxu0 %v347
        %v557 = vpop.f32.mrf.mxu0
        %v558 = vadd.f32 %v478, %v557
        %v559 = vpop.f32.mrf.mxu0
        %v560 = vadd.f32 %v482, %v559
        %561 = vmatprep.mubr.f32.mxu0 %v350
        %562 = vmatmul.mubr.f32.gmra.mxu0 %v349
        %v563 = vpop.f32.mrf.mxu0
        %v564 = vadd.f32 %v478, %v563
        %v565 = vpop.f32.mrf.mxu0
        %v566 = vadd.f32 %v482, %v565
        %567 = vmatprep.mubr.f32.mxu0 %v352
        %568 = vmatmul.mubr.f32.gmra.mxu0 %v351
        %v569 = vpop.f32.mrf.mxu0
        %v570 = vadd.f32 %v478, %v569
        %v571 = vpop.f32.mrf.mxu0
        %v572 = vadd.f32 %v482, %v571
        %573 = vmatprep.mubr.f32.mxu0 %v354
        %574 = vmatmul.mubr.f32.gmra.mxu0 %v353
        %v575 = vpop.f32.mrf.mxu0
        %v576 = vadd.f32 %v478, %v575
        %v577 = vpop.f32.mrf.mxu0
        %v578 = vadd.f32 %v482, %v577
        %579 = vmatprep.mubr.f32.mxu0 %v356
        %580 = vmatmul.mubr.f32.gmra.mxu0 %v355
        %v581 = vpop.f32.mrf.mxu0
        %v582 = vadd.f32 %v478, %v581
        %v583 = vpop.f32.mrf.mxu0
        %v584 = vadd.f32 %v482, %v583
        %585 = vmatprep.mubr.f32.mxu0 %v358
        %586 = vmatmul.mubr.f32.gmra.mxu0 %v357
        %v587 = vpop.f32.mrf.mxu0
        %v588 = vadd.f32 %v478, %v587
        %v589 = vpop.f32.mrf.mxu0
        %v590 = vadd.f32 %v482, %v589
        %591 = vmatprep.mubr.f32.mxu0 %v360
        %592 = vmatmul.mubr.f32.gmra.mxu0 %v359
        %v593 = vpop.f32.mrf.mxu0
        %v594 = vadd.f32 %v478, %v593
        %v595 = vpop.f32.mrf.mxu0
        %v596 = vadd.f32 %v482, %v595
        %597 = vmatprep.mubr.f32.mxu0 %v362
        %598 = vmatmul.mubr.f32.gmra.mxu0 %v361
        %v599 = vpop.f32.mrf.mxu0
        %v600 = vadd.f32 %v478, %v599
        %v601 = vpop.f32.mrf.mxu0
        %v602 = vadd.f32 %v482, %v601
        %603 = vmatprep.mubr.f32.mxu0 %v364
        %604 = vmatmul.mubr.f32.gmra.mxu0 %v363
        %v605 = vpop.f32.mrf.mxu0
        %v606 = vadd.f32 %v478, %v605
        %v607 = vpop.f32.mrf.mxu0
        %v608 = vadd.f32 %v482, %v607
        %609 = vmatprep.mubr.f32.mxu0 %v366
        %610 = vmatmul.mubr.f32.gmra.mxu0 %v365
        %v611 = vpop.f32.mrf.mxu0
        %v612 = vadd.f32 %v478, %v611
        %v613 = vpop.f32.mrf.mxu0
        %v614 = vadd.f32 %v482, %v613
        %615 = vmatprep.mubr.f32.mxu0 %v368
        %616 = vmatmul.mubr.f32.gmra.mxu0 %v367
        %v617 = vpop.f32.mrf.mxu0
        %v618 = vadd.f32 %v478, %v617
        %v619 = vpop.f32.mrf.mxu0
        %v620 = vadd.f32 %v482, %v619
        %621 = vmatprep.mubr.f32.mxu0 %v370
        %622 = vmatmul.mubr.f32.gmra.mxu0 %v369
        %v623 = vpop.f32.mrf.mxu0
        %v624 = vadd.f32 %v478, %v623
        %v625 = vpop.f32.mrf.mxu0
        %v626 = vadd.f32 %v482, %v625
        %627 = vmatprep.mubr.f32.mxu0 %v372
        %628 = vmatmul.mubr.f32.gmra.mxu0 %v371
        %v629 = vpop.f32.mrf.mxu0
        %v630 = vadd.f32 %v478, %v629
        %v631 = vpop.f32.mrf.mxu0
        %v632 = vadd.f32 %v482, %v631
        %633 = vmatprep.mubr.f32.mxu0 %v374
        %634 = vmatmul.mubr.f32.gmra.mxu0 %v373
        %v635 = vpop.f32.mrf.mxu0
        %v636 = vadd.f32 %v478, %v635
        %v637 = vpop.f32.mrf.mxu0
        %v638 = vadd.f32 %v482, %v637
        %639 = vmatprep.mubr.f32.mxu0 %v376
        %640 = vmatmul.mubr.f32.gmra.mxu0 %v375
        %v641 = vpop.f32.mrf.mxu0
        %v642 = vadd.f32 %v478, %v641
        %v643 = vpop.f32.mrf.mxu0
        %v644 = vadd.f32 %v482, %v643
        %645 = vmatprep.mubr.f32.mxu0 %v378
        %646 = vmatmul.mubr.f32.gmra.mxu0 %v377
        %v647 = vpop.f32.mrf.mxu0
        %v648 = vadd.f32 %v478, %v647
        %v649 = vpop.f32.mrf.mxu0
        %v650 = vadd.f32 %v482, %v649
        %651 = vmatprep.mubr.f32.mxu0 %v380
        %652 = vmatmul.mubr.f32.gmra.mxu0 %v379
        %v653 = vpop.f32.mrf.mxu0
        %v654 = vadd.f32 %v478, %v653
        %v655 = vpop.f32.mrf.mxu0
        %v656 = vadd.f32 %v482, %v655
        %657 = vmatprep.mubr.f32.mxu0 %v382
        %658 = vmatmul.mubr.f32.gmra.mxu0 %v381
        %v659 = vpop.f32.mrf.mxu0
        %v660 = vadd.f32 %v478, %v659
        %v661 = vpop.f32.mrf.mxu0
        %v662 = vadd.f32 %v482, %v661
        %663 = vmatprep.mubr.f32.mxu0 %v384
        %664 = vmatmul.mubr.f32.gmra.mxu0 %v383
        %v665 = vpop.f32.mrf.mxu0
        %v666 = vadd.f32 %v478, %v665
        %v667 = vpop.f32.mrf.mxu0
        %v668 = vadd.f32 %v482, %v667
        %669 = vmatprep.mubr.f32.mxu0 %v386
        %670 = vmatmul.mubr.f32.gmra.mxu0 %v385
        %v671 = vpop.f32.mrf.mxu0
        %v672 = vadd.f32 %v478, %v671
        %v673 = vpop.f32.mrf.mxu0
        %v674 = vadd.f32 %v482, %v673
        %675 = vmatprep.mubr.f32.mxu0 %v388
        %676 = vmatmul.mubr.f32.gmra.mxu0 %v387
        %v677 = vpop.f32.mrf.mxu0
        %v678 = vadd.f32 %v478, %v677
        %v679 = vpop.f32.mrf.mxu0
        %v680 = vadd.f32 %v482, %v679
        %681 = vmatprep.mubr.f32.mxu0 %v390
        %682 = vmatmul.mubr.f32.gmra.mxu0 %v389
        %v683 = vpop.f32.mrf.mxu0
        %v684 = vadd.f32 %v478, %v683
        %v685 = vpop.f32.mrf.mxu0
        %v686 = vadd.f32 %v482, %v685
        %687 = vmatprep.mubr.f32.mxu0 %v392
        %688 = vmatmul.mubr.f32.gmra.mxu0 %v391
        %v689 = vpop.f32.mrf.mxu0
        %v690 = vadd.f32 %v478, %v689
        %v691 = vpop.f32.mrf.mxu0
        %v692 = vadd.f32 %v482, %v691
        %693 = vmatprep.mubr.f32.mxu0 %v394
        %694 = vmatmul.mubr.f32.gmra.mxu0 %v393
        %v695 = vpop.f32.mrf.mxu0
        %v696 = vadd.f32 %v478, %v695
        %v697 = vpop.f32.mrf.mxu0
        %v698 = vadd.f32 %v482, %v697
        %699 = vmatprep.mubr.f32.mxu0 %v396
        %700 = vmatmul.mubr.f32.gmra.mxu0 %v395
        %v701 = vpop.f32.mrf.mxu0
        %v702 = vadd.f32 %v478, %v701
        %v703 = vpop.f32.mrf.mxu0
        %v704 = vadd.f32 %v482, %v703
        %705 = vmatprep.mubr.f32.mxu0 %v398
        %706 = vmatmul.mubr.f32.gmra.mxu0 %v397
        %v707 = vpop.f32.mrf.mxu0
        %v708 = vadd.f32 %v478, %v707
        %v709 = vpop.f32.mrf.mxu0
        %v710 = vadd.f32 %v482, %v709
        %711 = vmatprep.mubr.f32.mxu0 %v400
        %712 = vmatmul.mubr.f32.gmra.mxu0 %v399
        %v713 = vpop.f32.mrf.mxu0
        %v714 = vadd.f32 %v478, %v713
        %v715 = vpop.f32.mrf.mxu0
        %v716 = vadd.f32 %v482, %v715
        %717 = vmatprep.mubr.f32.mxu0 %v402
        %718 = vmatmul.mubr.f32.gmra.mxu0 %v401
        %v719 = vpop.f32.mrf.mxu0
        %v720 = vadd.f32 %v478, %v719
        %v721 = vpop.f32.mrf.mxu0
        %v722 = vadd.f32 %v482, %v721
        %723 = vmatprep.mubr.f32.mxu0 %v404
        %724 = vmatmul.mubr.f32.gmra.mxu0 %v403
        %v725 = vpop.f32.mrf.mxu0
        %v726 = vadd.f32 %v478, %v725
        %v727 = vpop.f32.mrf.mxu0
        %v728 = vadd.f32 %v482, %v727
        %729 = vmatprep.mubr.f32.mxu0 %v406
        %730 = vmatmul.mubr.f32.gmra.mxu0 %v405
        %v731 = vpop.f32.mrf.mxu0
        %v732 = vadd.f32 %v478, %v731
        %v733 = vpop.f32.mrf.mxu0
        %v734 = vadd.f32 %v482, %v733
        %735 = vmatprep.mubr.f32.mxu0 %v408
        %736 = vmatmul.mubr.f32.gmra.mxu0 %v407
        %v737 = vpop.f32.mrf.mxu0
        %v738 = vadd.f32 %v478, %v737
        %v739 = vpop.f32.mrf.mxu0
        %v740 = vadd.f32 %v482, %v739
        %741 = vdwg.mxu0
        %v742 = vmax.f32 %v552, 0.0
        %v743 = vmax.f32 %v554, 0.0
        %v744 = vmax.f32 %v558, 0.0
        %v745 = vmax.f32 %v560, 0.0
        %v746 = vmax.f32 %v564, 0.0
        %v747 = vmax.f32 %v566, 0.0
        %v748 = vmax.f32 %v570, 0.0
        %v749 = vmax.f32 %v572, 0.0
        %v750 = vmax.f32 %v576, 0.0
        %v751 = vmax.f32 %v578, 0.0
        %v752 = vmax.f32 %v582, 0.0
        %v753 = vmax.f32 %v584, 0.0
        %v754 = vmax.f32 %v588, 0.0
        %v755 = vmax.f32 %v590, 0.0
        %v756 = vmax.f32 %v594, 0.0
        %v757 = vmax.f32 %v596, 0.0
        %v758 = vmax.f32 %v600, 0.0
        %v759 = vmax.f32 %v602, 0.0
        %v760 = vmax.f32 %v606, 0.0
        %v761 = vmax.f32 %v608, 0.0
        %v762 = vmax.f32 %v612, 0.0
        %v763 = vmax.f32 %v614, 0.0
        %v764 = vmax.f32 %v618, 0.0
        %v765 = vmax.f32 %v620, 0.0
        %v766 = vmax.f32 %v624, 0.0
        %v767 = vmax.f32 %v626, 0.0
        %v768 = vmax.f32 %v630, 0.0
        %v769 = vmax.f32 %v632, 0.0
        %v770 = vmax.f32 %v636, 0.0
        %v771 = vmax.f32 %v638, 0.0
        %v772 = vmax.f32 %v642, 0.0
        %v773 = vmax.f32 %v644, 0.0
        %v774 = vmax.f32 %v648, 0.0
        %v775 = vmax.f32 %v650, 0.0
        %v776 = vmax.f32 %v654, 0.0
        %v777 = vmax.f32 %v656, 0.0
        %v778 = vmax.f32 %v660, 0.0
        %v779 = vmax.f32 %v662, 0.0
        %v780 = vmax.f32 %v666, 0.0
        %v781 = vmax.f32 %v668, 0.0
        %v782 = vmax.f32 %v672, 0.0
        %v783 = vmax.f32 %v674, 0.0
        %v784 = vmax.f32 %v678, 0.0
        %v785 = vmax.f32 %v680, 0.0
        %v786 = vmax.f32 %v684, 0.0
        %v787 = vmax.f32 %v686, 0.0
        %v788 = vmax.f32 %v690, 0.0
        %v789 = vmax.f32 %v692, 0.0
        %v790 = vmax.f32 %v696, 0.0
        %v791 = vmax.f32 %v698, 0.0
        %v792 = vmax.f32 %v702, 0.0
        %v793 = vmax.f32 %v704, 0.0
        %v794 = vmax.f32 %v708, 0.0
        %v795 = vmax.f32 %v710, 0.0
        %v796 = vmax.f32 %v714, 0.0
        %v797 = vmax.f32 %v716, 0.0
        %v798 = vmax.f32 %v720, 0.0
        %v799 = vmax.f32 %v722, 0.0
        %v800 = vmax.f32 %v726, 0.0
        %v801 = vmax.f32 %v728, 0.0
        %v802 = vmax.f32 %v732, 0.0
        %v803 = vmax.f32 %v734, 0.0
        %v804 = vmax.f32 %v738, 0.0
        %v805 = vmax.f32 %v740, 0.0
        %v806 = vld [vmem:[%s295] sm:$0xff]
        %v807 = vld [vmem:[%s295 + $0x8] sm:$0xff]
        %v808 = vld [vmem:[%s295 + $0x10] sm:$0xff]
        %v809 = vld [vmem:[%s295 + $0x18] sm:$0xff]
        %v810 = vld [vmem:[%s295 + $0x20] sm:$0xff]
        %v811 = vld [vmem:[%s295 + $0x28] sm:$0xff]
        %v812 = vld [vmem:[%s295 + $0x30] sm:$0xff]
        %v813 = vld [vmem:[%s295 + $0x38] sm:$0xff]
        %v814 = vld [vmem:[%s295 + $0x40] sm:$0xff]
        %v815 = vld [vmem:[%s295 + $0x48] sm:$0xff]
        %v816 = vld [vmem:[%s295 + $0x50] sm:$0xff]
        %v817 = vld [vmem:[%s295 + $0x58] sm:$0xff]
        %v818 = vld [vmem:[%s295 + $0x60] sm:$0xff]
        %v819 = vld [vmem:[%s295 + $0x68] sm:$0xff]
        %v820 = vld [vmem:[%s295 + $0x70] sm:$0xff]
        %v821 = vld [vmem:[%s295 + $0x78] sm:$0xff]
        %v822 = vld [vmem:[%s295 + $0x80] sm:$0xff]
        %v823 = vld [vmem:[%s295 + $0x88] sm:$0xff]
        %v824 = vld [vmem:[%s295 + $0x90] sm:$0xff]
        %v825 = vld [vmem:[%s295 + $0x98] sm:$0xff]
        %v826 = vld [vmem:[%s295 + $0xa0] sm:$0xff]
        %v827 = vld [vmem:[%s295 + $0xa8] sm:$0xff]
        %v828 = vld [vmem:[%s295 + $0xb0] sm:$0xff]
        %v829 = vld [vmem:[%s295 + $0xb8] sm:$0xff]
        %v830 = vld [vmem:[%s295 + $0xc0] sm:$0xff]
        %v831 = vld [vmem:[%s295 + $0xc8] sm:$0xff]
        %v832 = vld [vmem:[%s295 + $0xd0] sm:$0xff]
        %v833 = vld [vmem:[%s295 + $0xd8] sm:$0xff]
        %v834 = vld [vmem:[%s295 + $0xe0] sm:$0xff]
        %v835 = vld [vmem:[%s295 + $0xe8] sm:$0xff]
        %v836 = vld [vmem:[%s295 + $0xf0] sm:$0xff]
        %v837 = vld [vmem:[%s295 + $0xf8] sm:$0xff]
        %v838 = vld [vmem:[#allocation7] sm:$0xff]
        %v839 = vld [vmem:[#allocation7 + $0x8] sm:$0xff]
        %v840 = vld [vmem:[#allocation7 + $0x10] sm:$0xff]
        %v841 = vld [vmem:[#allocation7 + $0x18] sm:$0xff]
        %v842 = vld [vmem:[#allocation7 + $0x20] sm:$0xff]
        %v843 = vld [vmem:[#allocation7 + $0x28] sm:$0xff]
        %v844 = vld [vmem:[#allocation7 + $0x30] sm:$0xff]
        %v845 = vld [vmem:[#allocation7 + $0x38] sm:$0xff]
        %v846 = vld [vmem:[#allocation7 + $0x40] sm:$0xff]
        %v847 = vld [vmem:[#allocation7 + $0x48] sm:$0xff]
        %v848 = vld [vmem:[#allocation7 + $0x50] sm:$0xff]
        %v849 = vld [vmem:[#allocation7 + $0x58] sm:$0xff]
        %v850 = vld [vmem:[#allocation7 + $0x60] sm:$0xff]
        %v851 = vld [vmem:[#allocation7 + $0x68] sm:$0xff]
        %v852 = vld [vmem:[#allocation7 + $0x70] sm:$0xff]
        %v853 = vld [vmem:[#allocation7 + $0x78] sm:$0xff]
        %v854 = vld [vmem:[#allocation7 + $0x80] sm:$0xff]
        %v855 = vld [vmem:[#allocation7 + $0x88] sm:$0xff]
        %v856 = vld [vmem:[#allocation7 + $0x90] sm:$0xff]
        %v857 = vld [vmem:[#allocation7 + $0x98] sm:$0xff]
        %v858 = vld [vmem:[#allocation7 + $0xa0] sm:$0xff]
        %v859 = vld [vmem:[#allocation7 + $0xa8] sm:$0xff]
        %v860 = vld [vmem:[#allocation7 + $0xb0] sm:$0xff]
        %v861 = vld [vmem:[#allocation7 + $0xb8] sm:$0xff]
        %v862 = vld [vmem:[#allocation7 + $0xc0] sm:$0xff]
        %v863 = vld [vmem:[#allocation7 + $0xc8] sm:$0xff]
        %v864 = vld [vmem:[#allocation7 + $0xd0] sm:$0xff]
        %v865 = vld [vmem:[#allocation7 + $0xd8] sm:$0xff]
        %v866 = vld [vmem:[#allocation7 + $0xe0] sm:$0xff]
        %v867 = vld [vmem:[#allocation7 + $0xe8] sm:$0xff]
        %v868 = vld [vmem:[#allocation7 + $0xf0] sm:$0xff]
        %v869 = vld [vmem:[#allocation7 + $0xf8] sm:$0xff]
        %v870 = vld [vmem:[%s5] sm:$0x3]
        %v872 = vlaneseq
        %v873 = vshrl.u32 %v872, 7
        %v874 = vsub.s32 0, %v873
        %v875 = vrot.slane %v870, %v874
        %v876 = vlaneseq
        %v877 = vshrl.u32 %v876, 7
        %v878 = vsub.s32 1, %v877
        %v879 = vrot.slane %v870, %v878
        %882 = vmatprep.subr.mxu0 %v869
        %883 = vmatpush1.msra.mxu0 %v868
        %884 = vmatprep.subr.mxu0 %v867
        %885 = vmatpush1.msra.mxu0 %v866
        %886 = vmatprep.subr.mxu0 %v865
        %887 = vmatpush1.msra.mxu0 %v864
        %888 = vmatprep.subr.mxu0 %v863
        %889 = vmatpush1.msra.mxu0 %v862
        %890 = vmatprep.subr.mxu0 %v861
        %891 = vmatpush1.msra.mxu0 %v860
        %892 = vmatprep.subr.mxu0 %v859
        %893 = vmatpush1.msra.mxu0 %v858
        %894 = vmatprep.subr.mxu0 %v857
        %895 = vmatpush1.msra.mxu0 %v856
        %896 = vmatprep.subr.mxu0 %v855
        %897 = vmatpush1.msra.mxu0 %v854
        %898 = vmatprep.subr.mxu0 %v853
        %899 = vmatpush1.msra.mxu0 %v852
        %900 = vmatprep.subr.mxu0 %v851
        %901 = vmatpush1.msra.mxu0 %v850
        %902 = vmatprep.subr.mxu0 %v849
        %903 = vmatpush1.msra.mxu0 %v848
        %904 = vmatprep.subr.mxu0 %v847
        %905 = vmatpush1.msra.mxu0 %v846
        %906 = vmatprep.subr.mxu0 %v845
        %907 = vmatpush1.msra.mxu0 %v844
        %908 = vmatprep.subr.mxu0 %v843
        %909 = vmatpush1.msra.mxu0 %v842
        %910 = vmatprep.subr.mxu0 %v841
        %911 = vmatpush1.msra.mxu0 %v840
        %912 = vmatprep.subr.mxu0 %v839
        %913 = vmatpush1.msra.mxu0 %v838
        %914 = vmatprep.subr.mxu0 0.0
        %915 = vmatpush2.msra.mxu0 0.0
        %916 = vmatprep.subr.mxu0 0.0
        %917 = vmatpush2.msra.mxu0 0.0
        %918 = vmatprep.subr.mxu0 0.0
        %919 = vmatpush2.msra.mxu0 0.0
        %920 = vmatprep.subr.mxu0 0.0
        %921 = vmatpush2.msra.mxu0 0.0
        %922 = vmatprep.subr.mxu0 0.0
        %923 = vmatpush2.msra.mxu0 0.0
        %924 = vmatprep.subr.mxu0 0.0
        %925 = vmatpush2.msra.mxu0 0.0
        %926 = vmatprep.subr.mxu0 0.0
        %927 = vmatpush2.msra.mxu0 0.0
        %928 = vmatprep.subr.mxu0 0.0
        %929 = vmatpush2.msra.mxu0 0.0
        %930 = vmatprep.subr.mxu0 0.0
        %931 = vmatpush2.msra.mxu0 0.0
        %932 = vmatprep.subr.mxu0 0.0
        %933 = vmatpush2.msra.mxu0 0.0
        %934 = vmatprep.subr.mxu0 0.0
        %935 = vmatpush2.msra.mxu0 0.0
        %936 = vmatprep.subr.mxu0 0.0
        %937 = vmatpush2.msra.mxu0 0.0
        %938 = vmatprep.subr.mxu0 0.0
        %939 = vmatpush2.msra.mxu0 0.0
        %940 = vmatprep.subr.mxu0 0.0
        %941 = vmatpush2.msra.mxu0 0.0
        %942 = vmatprep.subr.mxu0 0.0
        %943 = vmatpush2.msra.mxu0 0.0
        %944 = vmatprep.subr.mxu0 0.0
        %945 = vmatpush2.msra.mxu0 0.0
        %946 = vmatprep.mubr.f32.mxu0 0.0
        %947 = vmatmul.mubr.f32.gmra.mxu0 %v806
        %v948 = vpop.f32.mrf.mxu0
        %v949 = vadd.f32 %v875, %v948
        %v950 = vpop.f32.mrf.mxu0
        %v951 = vadd.f32 %v879, %v950
        %952 = vmatprep.mubr.f32.mxu0 0.0
        %953 = vmatmul.mubr.f32.gmra.mxu0 %v807
        %v954 = vpop.f32.mrf.mxu0
        %v955 = vadd.f32 %v875, %v954
        %v956 = vpop.f32.mrf.mxu0
        %v957 = vadd.f32 %v879, %v956
        %958 = vmatprep.mubr.f32.mxu0 0.0
        %959 = vmatmul.mubr.f32.gmra.mxu0 %v808
        %v960 = vpop.f32.mrf.mxu0
        %v961 = vadd.f32 %v875, %v960
        %v962 = vpop.f32.mrf.mxu0
        %v963 = vadd.f32 %v879, %v962
        %964 = vmatprep.mubr.f32.mxu0 0.0
        %965 = vmatmul.mubr.f32.gmra.mxu0 %v809
        %v966 = vpop.f32.mrf.mxu0
        %v967 = vadd.f32 %v875, %v966
        %v968 = vpop.f32.mrf.mxu0
        %v969 = vadd.f32 %v879, %v968
        %970 = vmatprep.mubr.f32.mxu0 0.0
        %971 = vmatmul.mubr.f32.gmra.mxu0 %v810
        %v972 = vpop.f32.mrf.mxu0
        %v973 = vadd.f32 %v875, %v972
        %v974 = vpop.f32.mrf.mxu0
        %v975 = vadd.f32 %v879, %v974
        %976 = vmatprep.mubr.f32.mxu0 0.0
        %977 = vmatmul.mubr.f32.gmra.mxu0 %v811
        %v978 = vpop.f32.mrf.mxu0
        %v979 = vadd.f32 %v875, %v978
        %v980 = vpop.f32.mrf.mxu0
        %v981 = vadd.f32 %v879, %v980
        %982 = vmatprep.mubr.f32.mxu0 0.0
        %983 = vmatmul.mubr.f32.gmra.mxu0 %v812
        %v984 = vpop.f32.mrf.mxu0
        %v985 = vadd.f32 %v875, %v984
        %v986 = vpop.f32.mrf.mxu0
        %v987 = vadd.f32 %v879, %v986
        %988 = vmatprep.mubr.f32.mxu0 0.0
        %989 = vmatmul.mubr.f32.gmra.mxu0 %v813
        %v990 = vpop.f32.mrf.mxu0
        %v991 = vadd.f32 %v875, %v990
        %v992 = vpop.f32.mrf.mxu0
        %v993 = vadd.f32 %v879, %v992
        %994 = vmatprep.mubr.f32.mxu0 0.0
        %995 = vmatmul.mubr.f32.gmra.mxu0 %v814
        %v996 = vpop.f32.mrf.mxu0
        %v997 = vadd.f32 %v875, %v996
        %v998 = vpop.f32.mrf.mxu0
        %v999 = vadd.f32 %v879, %v998
        %1000 = vmatprep.mubr.f32.mxu0 0.0
        %1001 = vmatmul.mubr.f32.gmra.mxu0 %v815
        %v1002 = vpop.f32.mrf.mxu0
        %v1003 = vadd.f32 %v875, %v1002
        %v1004 = vpop.f32.mrf.mxu0
        %v1005 = vadd.f32 %v879, %v1004
        %1006 = vmatprep.mubr.f32.mxu0 0.0
        %1007 = vmatmul.mubr.f32.gmra.mxu0 %v816
        %v1008 = vpop.f32.mrf.mxu0
        %v1009 = vadd.f32 %v875, %v1008
        %v1010 = vpop.f32.mrf.mxu0
        %v1011 = vadd.f32 %v879, %v1010
        %1012 = vmatprep.mubr.f32.mxu0 0.0
        %1013 = vmatmul.mubr.f32.gmra.mxu0 %v817
        %v1014 = vpop.f32.mrf.mxu0
        %v1015 = vadd.f32 %v875, %v1014
        %v1016 = vpop.f32.mrf.mxu0
        %v1017 = vadd.f32 %v879, %v1016
        %1018 = vmatprep.mubr.f32.mxu0 0.0
        %1019 = vmatmul.mubr.f32.gmra.mxu0 %v818
        %v1020 = vpop.f32.mrf.mxu0
        %v1021 = vadd.f32 %v875, %v1020
        %v1022 = vpop.f32.mrf.mxu0
        %v1023 = vadd.f32 %v879, %v1022
        %1024 = vmatprep.mubr.f32.mxu0 0.0
        %1025 = vmatmul.mubr.f32.gmra.mxu0 %v819
        %v1026 = vpop.f32.mrf.mxu0
        %v1027 = vadd.f32 %v875, %v1026
        %v1028 = vpop.f32.mrf.mxu0
        %v1029 = vadd.f32 %v879, %v1028
        %1030 = vmatprep.mubr.f32.mxu0 0.0
        %1031 = vmatmul.mubr.f32.gmra.mxu0 %v820
        %v1032 = vpop.f32.mrf.mxu0
        %v1033 = vadd.f32 %v875, %v1032
        %v1034 = vpop.f32.mrf.mxu0
        %v1035 = vadd.f32 %v879, %v1034
        %1036 = vmatprep.mubr.f32.mxu0 0.0
        %1037 = vmatmul.mubr.f32.gmra.mxu0 %v821
        %v1038 = vpop.f32.mrf.mxu0
        %v1039 = vadd.f32 %v875, %v1038
        %v1040 = vpop.f32.mrf.mxu0
        %v1041 = vadd.f32 %v879, %v1040
        %1042 = vmatprep.mubr.f32.mxu0 0.0
        %1043 = vmatmul.mubr.f32.gmra.mxu0 %v822
        %v1044 = vpop.f32.mrf.mxu0
        %v1045 = vadd.f32 %v875, %v1044
        %v1046 = vpop.f32.mrf.mxu0
        %v1047 = vadd.f32 %v879, %v1046
        %1048 = vmatprep.mubr.f32.mxu0 0.0
        %1049 = vmatmul.mubr.f32.gmra.mxu0 %v823
        %v1050 = vpop.f32.mrf.mxu0
        %v1051 = vadd.f32 %v875, %v1050
        %v1052 = vpop.f32.mrf.mxu0
        %v1053 = vadd.f32 %v879, %v1052
        %1054 = vmatprep.mubr.f32.mxu0 0.0
        %1055 = vmatmul.mubr.f32.gmra.mxu0 %v824
        %v1056 = vpop.f32.mrf.mxu0
        %v1057 = vadd.f32 %v875, %v1056
        %v1058 = vpop.f32.mrf.mxu0
        %v1059 = vadd.f32 %v879, %v1058
        %1060 = vmatprep.mubr.f32.mxu0 0.0
        %1061 = vmatmul.mubr.f32.gmra.mxu0 %v825
        %v1062 = vpop.f32.mrf.mxu0
        %v1063 = vadd.f32 %v875, %v1062
        %v1064 = vpop.f32.mrf.mxu0
        %v1065 = vadd.f32 %v879, %v1064
        %1066 = vmatprep.mubr.f32.mxu0 0.0
        %1067 = vmatmul.mubr.f32.gmra.mxu0 %v826
        %v1068 = vpop.f32.mrf.mxu0
        %v1069 = vadd.f32 %v875, %v1068
        %v1070 = vpop.f32.mrf.mxu0
        %v1071 = vadd.f32 %v879, %v1070
        %1072 = vmatprep.mubr.f32.mxu0 0.0
        %1073 = vmatmul.mubr.f32.gmra.mxu0 %v827
        %v1074 = vpop.f32.mrf.mxu0
        %v1075 = vadd.f32 %v875, %v1074
        %v1076 = vpop.f32.mrf.mxu0
        %v1077 = vadd.f32 %v879, %v1076
        %1078 = vmatprep.mubr.f32.mxu0 0.0
        %1079 = vmatmul.mubr.f32.gmra.mxu0 %v828
        %v1080 = vpop.f32.mrf.mxu0
        %v1081 = vadd.f32 %v875, %v1080
        %v1082 = vpop.f32.mrf.mxu0
        %v1083 = vadd.f32 %v879, %v1082
        %1084 = vmatprep.mubr.f32.mxu0 0.0
        %1085 = vmatmul.mubr.f32.gmra.mxu0 %v829
        %v1086 = vpop.f32.mrf.mxu0
        %v1087 = vadd.f32 %v875, %v1086
        %v1088 = vpop.f32.mrf.mxu0
        %v1089 = vadd.f32 %v879, %v1088
        %1090 = vmatprep.mubr.f32.mxu0 0.0
        %1091 = vmatmul.mubr.f32.gmra.mxu0 %v830
        %v1092 = vpop.f32.mrf.mxu0
        %v1093 = vadd.f32 %v875, %v1092
        %v1094 = vpop.f32.mrf.mxu0
        %v1095 = vadd.f32 %v879, %v1094
        %1096 = vmatprep.mubr.f32.mxu0 0.0
        %1097 = vmatmul.mubr.f32.gmra.mxu0 %v831
        %v1098 = vpop.f32.mrf.mxu0
        %v1099 = vadd.f32 %v875, %v1098
        %v1100 = vpop.f32.mrf.mxu0
        %v1101 = vadd.f32 %v879, %v1100
        %1102 = vmatprep.mubr.f32.mxu0 0.0
        %1103 = vmatmul.mubr.f32.gmra.mxu0 %v832
        %v1104 = vpop.f32.mrf.mxu0
        %v1105 = vadd.f32 %v875, %v1104
        %v1106 = vpop.f32.mrf.mxu0
        %v1107 = vadd.f32 %v879, %v1106
        %1108 = vmatprep.mubr.f32.mxu0 0.0
        %1109 = vmatmul.mubr.f32.gmra.mxu0 %v833
        %v1110 = vpop.f32.mrf.mxu0
        %v1111 = vadd.f32 %v875, %v1110
        %v1112 = vpop.f32.mrf.mxu0
        %v1113 = vadd.f32 %v879, %v1112
        %1114 = vmatprep.mubr.f32.mxu0 0.0
        %1115 = vmatmul.mubr.f32.gmra.mxu0 %v834
        %v1116 = vpop.f32.mrf.mxu0
        %v1117 = vadd.f32 %v875, %v1116
        %v1118 = vpop.f32.mrf.mxu0
        %v1119 = vadd.f32 %v879, %v1118
        %1120 = vmatprep.mubr.f32.mxu0 0.0
        %1121 = vmatmul.mubr.f32.gmra.mxu0 %v835
        %v1122 = vpop.f32.mrf.mxu0
        %v1123 = vadd.f32 %v875, %v1122
        %v1124 = vpop.f32.mrf.mxu0
        %v1125 = vadd.f32 %v879, %v1124
        %1126 = vmatprep.mubr.f32.mxu0 0.0
        %1127 = vmatmul.mubr.f32.gmra.mxu0 %v836
        %v1128 = vpop.f32.mrf.mxu0
        %v1129 = vadd.f32 %v875, %v1128
        %v1130 = vpop.f32.mrf.mxu0
        %v1131 = vadd.f32 %v879, %v1130
        %1132 = vmatprep.mubr.f32.mxu0 0.0
        %1133 = vmatmul.mubr.f32.gmra.mxu0 %v837
        %v1134 = vpop.f32.mrf.mxu0
        %v1135 = vadd.f32 %v875, %v1134
        %v1136 = vpop.f32.mrf.mxu0
        %v1137 = vadd.f32 %v879, %v1136
        %1138 = vdwg.mxu0
        %v1139 = vmax.f32 %v949, 0.0
        %v1140 = vmax.f32 %v951, 0.0
        %v1141 = vmax.f32 %v955, 0.0
        %v1142 = vmax.f32 %v957, 0.0
        %v1143 = vmax.f32 %v961, 0.0
        %v1144 = vmax.f32 %v963, 0.0
        %v1145 = vmax.f32 %v967, 0.0
        %v1146 = vmax.f32 %v969, 0.0
        %v1147 = vmax.f32 %v973, 0.0
        %v1148 = vmax.f32 %v975, 0.0
        %v1149 = vmax.f32 %v979, 0.0
        %v1150 = vmax.f32 %v981, 0.0
        %v1151 = vmax.f32 %v985, 0.0
        %v1152 = vmax.f32 %v987, 0.0
        %v1153 = vmax.f32 %v991, 0.0
        %v1154 = vmax.f32 %v993, 0.0
        %v1155 = vmax.f32 %v997, 0.0
        %v1156 = vmax.f32 %v999, 0.0
        %v1157 = vmax.f32 %v1003, 0.0
        %v1158 = vmax.f32 %v1005, 0.0
        %v1159 = vmax.f32 %v1009, 0.0
        %v1160 = vmax.f32 %v1011, 0.0
        %v1161 = vmax.f32 %v1015, 0.0
        %v1162 = vmax.f32 %v1017, 0.0
        %v1163 = vmax.f32 %v1021, 0.0
        %v1164 = vmax.f32 %v1023, 0.0
        %v1165 = vmax.f32 %v1027, 0.0
        %v1166 = vmax.f32 %v1029, 0.0
        %v1167 = vmax.f32 %v1033, 0.0
        %v1168 = vmax.f32 %v1035, 0.0
        %v1169 = vmax.f32 %v1039, 0.0
        %v1170 = vmax.f32 %v1041, 0.0
        %v1171 = vmax.f32 %v1045, 0.0
        %v1172 = vmax.f32 %v1047, 0.0
        %v1173 = vmax.f32 %v1051, 0.0
        %v1174 = vmax.f32 %v1053, 0.0
        %v1175 = vmax.f32 %v1057, 0.0
        %v1176 = vmax.f32 %v1059, 0.0
        %v1177 = vmax.f32 %v1063, 0.0
        %v1178 = vmax.f32 %v1065, 0.0
        %v1179 = vmax.f32 %v1069, 0.0
        %v1180 = vmax.f32 %v1071, 0.0
        %v1181 = vmax.f32 %v1075, 0.0
        %v1182 = vmax.f32 %v1077, 0.0
        %v1183 = vmax.f32 %v1081, 0.0
        %v1184 = vmax.f32 %v1083, 0.0
        %v1185 = vmax.f32 %v1087, 0.0
        %v1186 = vmax.f32 %v1089, 0.0
        %v1187 = vmax.f32 %v1093, 0.0
        %v1188 = vmax.f32 %v1095, 0.0
        %v1189 = vmax.f32 %v1099, 0.0
        %v1190 = vmax.f32 %v1101, 0.0
        %v1191 = vmax.f32 %v1105, 0.0
        %v1192 = vmax.f32 %v1107, 0.0
        %v1193 = vmax.f32 %v1111, 0.0
        %v1194 = vmax.f32 %v1113, 0.0
        %v1195 = vmax.f32 %v1117, 0.0
        %v1196 = vmax.f32 %v1119, 0.0
        %v1197 = vmax.f32 %v1123, 0.0
        %v1198 = vmax.f32 %v1125, 0.0
        %v1199 = vmax.f32 %v1129, 0.0
        %v1200 = vmax.f32 %v1131, 0.0
        %v1201 = vmax.f32 %v1135, 0.0
        %v1202 = vmax.f32 %v1137, 0.0
        %v1203 = vmul.f32 %v742, %v1139
        %v1204 = vmul.f32 %v743, %v1140
        %v1205 = vmul.f32 %v744, %v1141
        %v1206 = vmul.f32 %v745, %v1142
        %v1207 = vmul.f32 %v746, %v1143
        %v1208 = vmul.f32 %v747, %v1144
        %v1209 = vmul.f32 %v748, %v1145
        %v1210 = vmul.f32 %v749, %v1146
        %v1211 = vmul.f32 %v750, %v1147
        %v1212 = vmul.f32 %v751, %v1148
        %v1213 = vmul.f32 %v752, %v1149
        %v1214 = vmul.f32 %v753, %v1150
        %v1215 = vmul.f32 %v754, %v1151
        %v1216 = vmul.f32 %v755, %v1152
        %v1217 = vmul.f32 %v756, %v1153
        %v1218 = vmul.f32 %v757, %v1154
        %v1219 = vmul.f32 %v758, %v1155
        %v1220 = vmul.f32 %v759, %v1156
        %v1221 = vmul.f32 %v760, %v1157
        %v1222 = vmul.f32 %v761, %v1158
        %v1223 = vmul.f32 %v762, %v1159
        %v1224 = vmul.f32 %v763, %v1160
        %v1225 = vmul.f32 %v764, %v1161
        %v1226 = vmul.f32 %v765, %v1162
        %v1227 = vmul.f32 %v766, %v1163
        %v1228 = vmul.f32 %v767, %v1164
        %v1229 = vmul.f32 %v768, %v1165
        %v1230 = vmul.f32 %v769, %v1166
        %v1231 = vmul.f32 %v770, %v1167
        %v1232 = vmul.f32 %v771, %v1168
        %v1233 = vmul.f32 %v772, %v1169
        %v1234 = vmul.f32 %v773, %v1170
        %v1235 = vmul.f32 %v774, %v1171
        %v1236 = vmul.f32 %v775, %v1172
        %v1237 = vmul.f32 %v776, %v1173
        %v1238 = vmul.f32 %v777, %v1174
        %v1239 = vmul.f32 %v778, %v1175
        %v1240 = vmul.f32 %v779, %v1176
        %v1241 = vmul.f32 %v780, %v1177
        %v1242 = vmul.f32 %v781, %v1178
        %v1243 = vmul.f32 %v782, %v1179
        %v1244 = vmul.f32 %v783, %v1180
        %v1245 = vmul.f32 %v784, %v1181
        %v1246 = vmul.f32 %v785, %v1182
        %v1247 = vmul.f32 %v786, %v1183
        %v1248 = vmul.f32 %v787, %v1184
        %v1249 = vmul.f32 %v788, %v1185
        %v1250 = vmul.f32 %v789, %v1186
        %v1251 = vmul.f32 %v790, %v1187
        %v1252 = vmul.f32 %v791, %v1188
        %v1253 = vmul.f32 %v792, %v1189
        %v1254 = vmul.f32 %v793, %v1190
        %v1255 = vmul.f32 %v794, %v1191
        %v1256 = vmul.f32 %v795, %v1192
        %v1257 = vmul.f32 %v796, %v1193
        %v1258 = vmul.f32 %v797, %v1194
        %v1259 = vmul.f32 %v798, %v1195
        %v1260 = vmul.f32 %v799, %v1196
        %v1261 = vmul.f32 %v800, %v1197
        %v1262 = vmul.f32 %v801, %v1198
        %v1263 = vmul.f32 %v802, %v1199
        %v1264 = vmul.f32 %v803, %v1200
        %v1265 = vmul.f32 %v804, %v1201
        %v1266 = vmul.f32 %v805, %v1202
        %1267 = vmatprep.subr.mxu0 0.0
        %1268 = vmatpush1.msra.mxu0 1.0
        %1269 = vmatprep.subr.mxu0 0.0
        %1270 = vmatpush1.msra.mxu0 1.0
        %1271 = vmatprep.subr.mxu0 0.0
        %1272 = vmatpush1.msra.mxu0 1.0
        %1273 = vmatprep.subr.mxu0 0.0
        %1274 = vmatpush1.msra.mxu0 1.0
        %1275 = vmatprep.subr.mxu0 0.0
        %1276 = vmatpush1.msra.mxu0 1.0
        %1277 = vmatprep.subr.mxu0 0.0
        %1278 = vmatpush1.msra.mxu0 1.0
        %1279 = vmatprep.subr.mxu0 0.0
        %1280 = vmatpush1.msra.mxu0 1.0
        %1281 = vmatprep.subr.mxu0 0.0
        %1282 = vmatpush1.msra.mxu0 1.0
        %1283 = vmatprep.subr.mxu0 0.0
        %1284 = vmatpush1.msra.mxu0 1.0
        %1285 = vmatprep.subr.mxu0 0.0
        %1286 = vmatpush1.msra.mxu0 1.0
        %1287 = vmatprep.subr.mxu0 0.0
        %1288 = vmatpush1.msra.mxu0 1.0
        %1289 = vmatprep.subr.mxu0 0.0
        %1290 = vmatpush1.msra.mxu0 1.0
        %1291 = vmatprep.subr.mxu0 0.0
        %1292 = vmatpush1.msra.mxu0 1.0
        %1293 = vmatprep.subr.mxu0 0.0
        %1294 = vmatpush1.msra.mxu0 1.0
        %1295 = vmatprep.subr.mxu0 0.0
        %1296 = vmatpush1.msra.mxu0 1.0
        %1297 = vmatprep.subr.mxu0 0.0
        %1298 = vmatpush1.msra.mxu0 1.0
        %1299 = vmatprep.subr.mxu0 0.0
        %1300 = vmatpush2.msra.mxu0 1.0
        %1301 = vmatprep.subr.mxu0 0.0
        %1302 = vmatpush2.msra.mxu0 1.0
        %1303 = vmatprep.subr.mxu0 0.0
        %1304 = vmatpush2.msra.mxu0 1.0
        %1305 = vmatprep.subr.mxu0 0.0
        %1306 = vmatpush2.msra.mxu0 1.0
        %1307 = vmatprep.subr.mxu0 0.0
        %1308 = vmatpush2.msra.mxu0 1.0
        %1309 = vmatprep.subr.mxu0 0.0
        %1310 = vmatpush2.msra.mxu0 1.0
        %1311 = vmatprep.subr.mxu0 0.0
        %1312 = vmatpush2.msra.mxu0 1.0
        %1313 = vmatprep.subr.mxu0 0.0
        %1314 = vmatpush2.msra.mxu0 1.0
        %1315 = vmatprep.subr.mxu0 0.0
        %1316 = vmatpush2.msra.mxu0 1.0
        %1317 = vmatprep.subr.mxu0 0.0
        %1318 = vmatpush2.msra.mxu0 1.0
        %1319 = vmatprep.subr.mxu0 0.0
        %1320 = vmatpush2.msra.mxu0 1.0
        %1321 = vmatprep.subr.mxu0 0.0
        %1322 = vmatpush2.msra.mxu0 1.0
        %1323 = vmatprep.subr.mxu0 0.0
        %1324 = vmatpush2.msra.mxu0 1.0
        %1325 = vmatprep.subr.mxu0 0.0
        %1326 = vmatpush2.msra.mxu0 1.0
        %1327 = vmatprep.subr.mxu0 0.0
        %1328 = vmatpush2.msra.mxu0 1.0
        %1329 = vmatprep.subr.mxu0 0.0
        %1330 = vmatpush2.msra.mxu0 1.0
        %1331 = vmatprep.mubr.f32.mxu0 %v1204
        %1332 = vmatmul.mubr.f32.gmra.mxu0 %v1203
        %v1333 = vpop.f32.mrf.mxu0
        %v1334 = vadd.f32 0.0, %v1333
        %v1335 = vpop.f32.mrf.mxu0
        %1336 = vmatprep.mubr.f32.mxu0 %v1206
        %1337 = vmatmul.mubr.f32.gmra.mxu0 %v1205
        %v1338 = vpop.f32.mrf.mxu0
        %v1339 = vadd.f32 0.0, %v1338
        %v1340 = vpop.f32.mrf.mxu0
        %1341 = vmatprep.mubr.f32.mxu0 %v1208
        %1342 = vmatmul.mubr.f32.gmra.mxu0 %v1207
        %v1343 = vpop.f32.mrf.mxu0
        %v1344 = vadd.f32 0.0, %v1343
        %v1345 = vpop.f32.mrf.mxu0
        %1346 = vmatprep.mubr.f32.mxu0 %v1210
        %1347 = vmatmul.mubr.f32.gmra.mxu0 %v1209
        %v1348 = vpop.f32.mrf.mxu0
        %v1349 = vadd.f32 0.0, %v1348
        %v1350 = vpop.f32.mrf.mxu0
        %1351 = vmatprep.mubr.f32.mxu0 %v1212
        %1352 = vmatmul.mubr.f32.gmra.mxu0 %v1211
        %v1353 = vpop.f32.mrf.mxu0
        %v1354 = vadd.f32 0.0, %v1353
        %v1355 = vpop.f32.mrf.mxu0
        %1356 = vmatprep.mubr.f32.mxu0 %v1214
        %1357 = vmatmul.mubr.f32.gmra.mxu0 %v1213
        %v1358 = vpop.f32.mrf.mxu0
        %v1359 = vadd.f32 0.0, %v1358
        %v1360 = vpop.f32.mrf.mxu0
        %1361 = vmatprep.mubr.f32.mxu0 %v1216
        %1362 = vmatmul.mubr.f32.gmra.mxu0 %v1215
        %v1363 = vpop.f32.mrf.mxu0
        %v1364 = vadd.f32 0.0, %v1363
        %v1365 = vpop.f32.mrf.mxu0
        %1366 = vmatprep.mubr.f32.mxu0 %v1218
        %1367 = vmatmul.mubr.f32.gmra.mxu0 %v1217
        %v1368 = vpop.f32.mrf.mxu0
        %v1369 = vadd.f32 0.0, %v1368
        %v1370 = vpop.f32.mrf.mxu0
        %1371 = vmatprep.mubr.f32.mxu0 %v1220
        %1372 = vmatmul.mubr.f32.gmra.mxu0 %v1219
        %v1373 = vpop.f32.mrf.mxu0
        %v1374 = vadd.f32 0.0, %v1373
        %v1375 = vpop.f32.mrf.mxu0
        %1376 = vmatprep.mubr.f32.mxu0 %v1222
        %1377 = vmatmul.mubr.f32.gmra.mxu0 %v1221
        %v1378 = vpop.f32.mrf.mxu0
        %v1379 = vadd.f32 0.0, %v1378
        %v1380 = vpop.f32.mrf.mxu0
        %1381 = vmatprep.mubr.f32.mxu0 %v1224
        %1382 = vmatmul.mubr.f32.gmra.mxu0 %v1223
        %v1383 = vpop.f32.mrf.mxu0
        %v1384 = vadd.f32 0.0, %v1383
        %v1385 = vpop.f32.mrf.mxu0
        %1386 = vmatprep.mubr.f32.mxu0 %v1226
        %1387 = vmatmul.mubr.f32.gmra.mxu0 %v1225
        %v1388 = vpop.f32.mrf.mxu0
        %v1389 = vadd.f32 0.0, %v1388
        %v1390 = vpop.f32.mrf.mxu0
        %1391 = vmatprep.mubr.f32.mxu0 %v1228
        %1392 = vmatmul.mubr.f32.gmra.mxu0 %v1227
        %v1393 = vpop.f32.mrf.mxu0
        %v1394 = vadd.f32 0.0, %v1393
        %v1395 = vpop.f32.mrf.mxu0
        %1396 = vmatprep.mubr.f32.mxu0 %v1230
        %1397 = vmatmul.mubr.f32.gmra.mxu0 %v1229
        %v1398 = vpop.f32.mrf.mxu0
        %v1399 = vadd.f32 0.0, %v1398
        %v1400 = vpop.f32.mrf.mxu0
        %1401 = vmatprep.mubr.f32.mxu0 %v1232
        %1402 = vmatmul.mubr.f32.gmra.mxu0 %v1231
        %v1403 = vpop.f32.mrf.mxu0
        %v1404 = vadd.f32 0.0, %v1403
        %v1405 = vpop.f32.mrf.mxu0
        %1406 = vmatprep.mubr.f32.mxu0 %v1234
        %1407 = vmatmul.mubr.f32.gmra.mxu0 %v1233
        %v1408 = vpop.f32.mrf.mxu0
        %v1409 = vadd.f32 0.0, %v1408
        %v1410 = vpop.f32.mrf.mxu0
        %1411 = vmatprep.mubr.f32.mxu0 %v1236
        %1412 = vmatmul.mubr.f32.gmra.mxu0 %v1235
        %v1413 = vpop.f32.mrf.mxu0
        %v1414 = vadd.f32 0.0, %v1413
        %v1415 = vpop.f32.mrf.mxu0
        %1416 = vmatprep.mubr.f32.mxu0 %v1238
        %1417 = vmatmul.mubr.f32.gmra.mxu0 %v1237
        %v1418 = vpop.f32.mrf.mxu0
        %v1419 = vadd.f32 0.0, %v1418
        %v1420 = vpop.f32.mrf.mxu0
        %1421 = vmatprep.mubr.f32.mxu0 %v1240
        %1422 = vmatmul.mubr.f32.gmra.mxu0 %v1239
        %v1423 = vpop.f32.mrf.mxu0
        %v1424 = vadd.f32 0.0, %v1423
        %v1425 = vpop.f32.mrf.mxu0
        %1426 = vmatprep.mubr.f32.mxu0 %v1242
        %1427 = vmatmul.mubr.f32.gmra.mxu0 %v1241
        %v1428 = vpop.f32.mrf.mxu0
        %v1429 = vadd.f32 0.0, %v1428
        %v1430 = vpop.f32.mrf.mxu0
        %1431 = vmatprep.mubr.f32.mxu0 %v1244
        %1432 = vmatmul.mubr.f32.gmra.mxu0 %v1243
        %v1433 = vpop.f32.mrf.mxu0
        %v1434 = vadd.f32 0.0, %v1433
        %v1435 = vpop.f32.mrf.mxu0
        %1436 = vmatprep.mubr.f32.mxu0 %v1246
        %1437 = vmatmul.mubr.f32.gmra.mxu0 %v1245
        %v1438 = vpop.f32.mrf.mxu0
        %v1439 = vadd.f32 0.0, %v1438
        %v1440 = vpop.f32.mrf.mxu0
        %1441 = vmatprep.mubr.f32.mxu0 %v1248
        %1442 = vmatmul.mubr.f32.gmra.mxu0 %v1247
        %v1443 = vpop.f32.mrf.mxu0
        %v1444 = vadd.f32 0.0, %v1443
        %v1445 = vpop.f32.mrf.mxu0
        %1446 = vmatprep.mubr.f32.mxu0 %v1250
        %1447 = vmatmul.mubr.f32.gmra.mxu0 %v1249
        %v1448 = vpop.f32.mrf.mxu0
        %v1449 = vadd.f32 0.0, %v1448
        %v1450 = vpop.f32.mrf.mxu0
        %1451 = vmatprep.mubr.f32.mxu0 %v1252
        %1452 = vmatmul.mubr.f32.gmra.mxu0 %v1251
        %v1453 = vpop.f32.mrf.mxu0
        %v1454 = vadd.f32 0.0, %v1453
        %v1455 = vpop.f32.mrf.mxu0
        %1456 = vmatprep.mubr.f32.mxu0 %v1254
        %1457 = vmatmul.mubr.f32.gmra.mxu0 %v1253
        %v1458 = vpop.f32.mrf.mxu0
        %v1459 = vadd.f32 0.0, %v1458
        %v1460 = vpop.f32.mrf.mxu0
        %1461 = vmatprep.mubr.f32.mxu0 %v1256
        %1462 = vmatmul.mubr.f32.gmra.mxu0 %v1255
        %v1463 = vpop.f32.mrf.mxu0
        %v1464 = vadd.f32 0.0, %v1463
        %v1465 = vpop.f32.mrf.mxu0
        %1466 = vmatprep.mubr.f32.mxu0 %v1258
        %1467 = vmatmul.mubr.f32.gmra.mxu0 %v1257
        %v1468 = vpop.f32.mrf.mxu0
        %v1469 = vadd.f32 0.0, %v1468
        %v1470 = vpop.f32.mrf.mxu0
        %1471 = vmatprep.mubr.f32.mxu0 %v1260
        %1472 = vmatmul.mubr.f32.gmra.mxu0 %v1259
        %v1473 = vpop.f32.mrf.mxu0
        %v1474 = vadd.f32 0.0, %v1473
        %v1475 = vpop.f32.mrf.mxu0
        %1476 = vmatprep.mubr.f32.mxu0 %v1262
        %1477 = vmatmul.mubr.f32.gmra.mxu0 %v1261
        %v1478 = vpop.f32.mrf.mxu0
        %v1479 = vadd.f32 0.0, %v1478
        %v1480 = vpop.f32.mrf.mxu0
        %1481 = vmatprep.mubr.f32.mxu0 %v1264
        %1482 = vmatmul.mubr.f32.gmra.mxu0 %v1263
        %v1483 = vpop.f32.mrf.mxu0
        %v1484 = vadd.f32 0.0, %v1483
        %v1485 = vpop.f32.mrf.mxu0
        %1486 = vmatprep.mubr.f32.mxu0 %v1266
        %1487 = vmatmul.mubr.f32.gmra.mxu0 %v1265
        %v1488 = vpop.f32.mrf.mxu0
        %v1489 = vadd.f32 0.0, %v1488
        %v1490 = vpop.f32.mrf.mxu0
        %1491 = vdwg.mxu0
        %vm1492 = vcmask 7168
        %1493 = vst.msk [vmem:[%s343] sm:$0xff] %vm1492, %v1334
        %1494 = vst.msk [vmem:[%s343 + $0x8] sm:$0xff] %vm1492, %v1339
        %1495 = vst.msk [vmem:[%s343 + $0x10] sm:$0xff] %vm1492, %v1344
        %1496 = vst.msk [vmem:[%s343 + $0x18] sm:$0xff] %vm1492, %v1349
        %1497 = vst.msk [vmem:[%s343 + $0x20] sm:$0xff] %vm1492, %v1354
        %1498 = vst.msk [vmem:[%s343 + $0x28] sm:$0xff] %vm1492, %v1359
        %1499 = vst.msk [vmem:[%s343 + $0x30] sm:$0xff] %vm1492, %v1364
        %1500 = vst.msk [vmem:[%s343 + $0x38] sm:$0xff] %vm1492, %v1369
        %1501 = vst.msk [vmem:[%s343 + $0x40] sm:$0xff] %vm1492, %v1374
        %1502 = vst.msk [vmem:[%s343 + $0x48] sm:$0xff] %vm1492, %v1379
        %1503 = vst.msk [vmem:[%s343 + $0x50] sm:$0xff] %vm1492, %v1384
        %1504 = vst.msk [vmem:[%s343 + $0x58] sm:$0xff] %vm1492, %v1389
        %1505 = vst.msk [vmem:[%s343 + $0x60] sm:$0xff] %vm1492, %v1394
        %1506 = vst.msk [vmem:[%s343 + $0x68] sm:$0xff] %vm1492, %v1399
        %1507 = vst.msk [vmem:[%s343 + $0x70] sm:$0xff] %vm1492, %v1404
        %1508 = vst.msk [vmem:[%s343 + $0x78] sm:$0xff] %vm1492, %v1409
        %1509 = vst.msk [vmem:[%s343 + $0x80] sm:$0xff] %vm1492, %v1414
        %1510 = vst.msk [vmem:[%s343 + $0x88] sm:$0xff] %vm1492, %v1419
        %1511 = vst.msk [vmem:[%s343 + $0x90] sm:$0xff] %vm1492, %v1424
        %1512 = vst.msk [vmem:[%s343 + $0x98] sm:$0xff] %vm1492, %v1429
        %1513 = vst.msk [vmem:[%s343 + $0xa0] sm:$0xff] %vm1492, %v1434
        %1514 = vst.msk [vmem:[%s343 + $0xa8] sm:$0xff] %vm1492, %v1439
        %1515 = vst.msk [vmem:[%s343 + $0xb0] sm:$0xff] %vm1492, %v1444
        %1516 = vst.msk [vmem:[%s343 + $0xb8] sm:$0xff] %vm1492, %v1449
        %1517 = vst.msk [vmem:[%s343 + $0xc0] sm:$0xff] %vm1492, %v1454
        %1518 = vst.msk [vmem:[%s343 + $0xc8] sm:$0xff] %vm1492, %v1459
        %1519 = vst.msk [vmem:[%s343 + $0xd0] sm:$0xff] %vm1492, %v1464
        %1520 = vst.msk [vmem:[%s343 + $0xd8] sm:$0xff] %vm1492, %v1469
        %1521 = vst.msk [vmem:[%s343 + $0xe0] sm:$0xff] %vm1492, %v1474
        %1522 = vst.msk [vmem:[%s343 + $0xe8] sm:$0xff] %vm1492, %v1479
        %1523 = vst.msk [vmem:[%s343 + $0xf0] sm:$0xff] %vm1492, %v1484
        %1524 = vst.msk [vmem:[%s343 + $0xf8] sm:$0xff] %vm1492, %v1489
        %s1525 = smul.u32 32, %s24
        %p1526 = scmp.lt.s32.totalorder %s1525, 63
        %s1527 = scalar_select %p1526, %s1525, 63
        %s1528 = smul.addr %s1527, 8
        %s1529 = scalar_lea.vmem %s6, %s1528
        // Predicated region
        $region61: #{tpu_custom_call.1} parent=43 // pred_check
          %p1530 = pneg %p178
        $region62: #{tpu_custom_call.1} parent=43 // pred_check_branch
          %1532 = sbr.rel (%p1530) target = $region64
        $region63: #{tpu_custom_call.1} parent=43 // pred_region
          %s1533 = smul.u32 32, %s24
        $region64: #{tpu_custom_call.1} parent=43 // pred_fallthru
          _
      $region44: #{tpu_custom_call.1} parent=5 // pred_fallthru
        _
      %p1534 = scmp.le.s32.totalorder 2, %s19
      // Predicated region
      $region65: #{tpu_custom_call.1} parent=5 // pred_check
        %p1535 = pneg %p1534
      $region66: #{tpu_custom_call.1} parent=5 // pred_check_branch
        %1537 = sbr.rel (%p1535) target = $region68
      $region67: #{tpu_custom_call.1} parent=5 // pred_region
        %s1538 = ssub.s32 %s19, 2
        // Predicated region
        $region69: #{tpu_custom_call.1} parent=67 // pred_check
          %p1539 = pneg %p184
        $region70: #{tpu_custom_call.1} parent=67 // pred_check_branch
          %1541 = sbr.rel (%p1539) target = $region72
        $region71: #{tpu_custom_call.1} parent=67 // pred_region
          %s1542 = smul.u32 32, %s25
          %p1543 = scmp.lt.s32.totalorder %s1542, 63
          %s1544 = scalar_select %p1543, %s1542, 63
          %s1545 = smul.addr %s1544, 8
          %s1546 = scalar_lea.vmem %s6, %s1545
        $region72: #{tpu_custom_call.1} parent=67 // pred_fallthru
          _
      $region68: #{tpu_custom_call.1} parent=5 // pred_fallthru
        _
    $region6: #{tpu_custom_call.1} parent=1 // loop_footer
      %s23 = sadd.s32 1, %s19
    $region7: #{tpu_custom_call.1} parent=1 // loop_footer_branch
      %18 = sbr.rel target = $region3
    $region8: #{tpu_custom_call.1} parent=1 // loop_exit
      _
    %1547 = vsyncpa [#allocation3], 1
    %s1548 = scalar_lea.sflag [#allocation3], 1
    %1549 = vsyncpa %s1548, 1
    %1550 = vsyncpa [#allocation5], 1
    %s1551 = scalar_lea.sflag [#allocation5], 1
    %1552 = vsyncpa %s1551, 1
    %1553 = vsyncpa [#allocation8], 1

</llo_original>
